<compile_context>
chip_gen: v7x
topology: tpu7x:2x2x1
jax: 0.10.0
libtpu: 0.0.40
codegen_flags: <defaults>
</compile_context>

<pallas_src>
import math
import functools

import numpy as np
import jax
import jax.numpy as jnp
from jax.experimental import pallas as pl
from jax.experimental.pallas import tpu as pltpu


def _top_attn_kernel(x_ref, y_ref, z_ref, wq_ref, wk_ref, wv_ref, wo_ref,
                     o_ref,
                     q_scr, ctx_scr, m_scr, l_scr,
                     *, num_heads, head_dim, inv_sqrt_hd, thr, matmul_dtype):
    """Grid = (batch_blocks, kv_blocks).  One step: one (batch block, kv tile)."""
    Bb, Tq, Dq = x_ref.shape
    _, Tkb, Dk = y_ref.shape
    _, _, Dv = z_ref.shape
    NH = num_heads * head_dim
    NHp = wo_ref.shape[1]

    kstep = pl.program_id(1)
    nks = pl.num_programs(1)

    if matmul_dtype is not None:
        cast = lambda t: t.astype(matmul_dtype)       # MXU operands only
    else:
        cast = lambda t: t

    # ---- once per batch block: project Q, reset online-softmax state --------
    @pl.when(kstep == 0)
    def _init():
        xf = x_ref[...].reshape(Bb * Tq, Dq)          # Tq % 8 == 0 or Bb == 1 -> free
        q_scr[...] = jnp.dot(cast(xf), cast(wq_ref[...]),
                             preferred_element_type=jnp.float32)
        ctx_scr[...] = jnp.zeros_like(ctx_scr)
        m_scr[...] = jnp.full_like(m_scr, -jnp.inf)
        l_scr[...] = jnp.zeros_like(l_scr)

    # ---- per kv tile: project K/V for this tile only ------------------------
    yf = y_ref[...].reshape(Bb * Tkb, Dk)
    zf = z_ref[...].reshape(Bb * Tkb, Dv)
    k = jnp.dot(cast(yf), cast(wk_ref[...]),
                preferred_element_type=jnp.float32).reshape(Bb, Tkb, NH)
    v = jnp.dot(cast(zf), cast(wv_ref[...]),
                preferred_element_type=jnp.float32).reshape(Bb, Tkb, NH)

    # ---- online softmax with logit-space gate, per head ----------------------
    # (heads handled with 3D single-batch einsums; per-head state is flushed to
    #  scratch every iteration so live ranges stay bounded despite the unroll)
    for h in range(num_heads):
        lanes = slice(h * head_dim, (h + 1) * head_dim)
        rows = slice(h * Bb, (h + 1) * Bb)

        qh = q_scr[:, lanes].reshape(Bb, Tq, head_dim)   # (Bb, Tq, hd)
        kh = k[:, :, lanes]                              # (Bb, Tkb, hd)
        vh = v[:, :, lanes]                              # (Bb, Tkb, hd)

        s = jnp.einsum("bqd,bkd->bqk", cast(qh), cast(kh),
                       preferred_element_type=jnp.float32) * inv_sqrt_hd

        m_prev = m_scr[rows]                              # (Bb, Tq, 1)
        l_prev = l_scr[rows]
        m_new = jnp.maximum(m_prev, jnp.max(s, axis=-1, keepdims=True))
        alpha = jnp.exp(m_prev - m_new)
        e = jnp.exp(s - m_new)

        l_scr[rows] = alpha * l_prev + jnp.sum(e, axis=-1, keepdims=True)
        m_scr[rows] = m_new

        # sigmoid(s) > rate  <=>  s > thr ; gate the numerator only.
        e_gated = jnp.where(s > thr, e, jnp.zeros_like(e))
        ctx_h = jnp.einsum("bqk,bkd->bqd", cast(e_gated), cast(vh),
                           preferred_element_type=jnp.float32)   # (Bb, Tq, hd)

        ctx_scr[rows] = alpha * ctx_scr[rows] + ctx_h

    # ---- last kv tile: normalize and fold heads through W_o (lane-dense out) -
    @pl.when(kstep == nks - 1)
    def _finalize():
        out = jnp.zeros((Bb * Tq, NHp), jnp.float32)
        for h in range(num_heads):
            rows = slice(h * Bb, (h + 1) * Bb)
            wrows = slice(h * head_dim, (h + 1) * head_dim)
            inv_l = pl.reciprocal(l_scr[rows], approx=True)      # EUP slot
            ctx_h = (ctx_scr[rows] * inv_l).reshape(Bb * Tq, head_dim)
            out = out + jnp.dot(cast(ctx_h), cast(wo_ref[wrows, :]),
                                preferred_element_type=jnp.float32)
        o_ref[...] = out.reshape(Bb, Tq, NHp).astype(o_ref.dtype)


def top_multi_attention(x, y, z, rate, wq, wk, wv, wo, num_heads,
                        *, block_b=None, block_k=None, matmul_dtype=None):
    """x: (B, Tq, Dq), y: (B, Tk, Dk), z: (B, Tk, Dv); weights (Din, NH), wo (NH, NH).

    `rate` must be a concrete Python float (as in the module's forward call).
    `matmul_dtype=jnp.bfloat16` casts MXU operands in-kernel (f32 accumulation);
    recommended on v6e/v7x, but gate decisions near s == logit(rate) may flip.
    """
    B, Tq, Dq = x.shape
    By, Tk, Dk = y.shape
    Bz, Tkz, Dv = z.shape
    assert By == B and Bz == B and Tkz == Tk, "batch / key-length mismatch"
    NH = wq.shape[1]
    assert NH % num_heads == 0, "num_heads must divide num_hiddens"
    head_dim = NH // num_heads
    out_dtype = x.dtype

    # -- batch-block heuristic: fill MXU rows but keep grid depth for pipelining.
    if block_b is None:
        block_b = 1
        min_steps = min(8, B)
        for cand in range(1, B + 1):
            if B % cand:
                continue
            if cand * Tq <= 1024 and (B // cand) >= min_steps:
                block_b = cand
    assert B % block_b == 0, "block_b must divide the batch size"

    # -- kv tile: bounds score-matrix / K / V VMEM residency at long sequences.
    if block_k is None:
        block_k = Tk
        for cand in (512, 256, 128):
            if Tk % cand == 0:
                block_k = cand
                break
    assert Tk % block_k == 0
    assert block_k == Tk or block_k % 8 == 0

    # -- lane-dense output: pad W_o columns to a multiple of 128, slice after.
    NHp = ((NH + 127) // 128) * 128
    wo_p = wo if NHp == NH else jnp.pad(wo, ((0, 0), (0, NHp - NH)))

    # -- gate threshold as a compile-time constant (sigmoid monotonic).
    if rate <= 0.0:
        thr = -float("inf")
    elif rate >= 1.0:
        thr = float("inf")
    else:
        thr = math.log(rate / (1.0 - rate))

    # -- advisory cost estimate for XLA's scheduler.
    H = num_heads
    flops = 2 * B * (Tq * Dq * NH + Tk * Dk * NH + Tk * Dv * NH
                     + 2 * H * Tq * Tk * head_dim + Tq * NH * NHp)
    transcendentals = B * H * Tq * Tk
    isz = jnp.dtype(x.dtype).itemsize
    bytes_accessed = ((B * Tq * Dq + B * Tk * (Dk + Dv)) * isz
                      + ((Dq + Dk + Dv) * NH + NH * NHp) * 4
                      + B * Tq * NHp * jnp.dtype(out_dtype).itemsize)

    # -- explicit VMEM budget (re-derived, clamped to v7x's 64 MiB physical).
    blk_in = (block_b * Tq * Dq + block_b * block_k * (Dk + Dv)) * isz
    w_bytes = ((Dq + Dk + Dv) * NH + NH * NHp) * 4
    blk_out = block_b * Tq * NHp * jnp.dtype(out_dtype).itemsize
    scr_bytes = (block_b * Tq * NH + H * block_b * Tq * (head_dim + 2)) * 4
    est = 2 * blk_in + 2 * w_bytes + 2 * blk_out + scr_bytes
    vmem_limit = int(min(64 << 20, max(32 << 20, 2 * est)))

    kernel = functools.partial(
        _top_attn_kernel, num_heads=num_heads, head_dim=head_dim,
        inv_sqrt_hd=1.0 / math.sqrt(head_dim), thr=thr,
        matmul_dtype=matmul_dtype)

    out = pl.pallas_call(
        kernel,
        out_shape=jax.ShapeDtypeStruct((B, Tq, NHp), out_dtype),
        grid=(B // block_b, Tk // block_k),
        in_specs=[
            pl.BlockSpec((block_b, Tq, Dq), lambda b, k: (b, 0, 0)),      # X
            pl.BlockSpec((block_b, block_k, Dk), lambda b, k: (b, k, 0)),  # Y
            pl.BlockSpec((block_b, block_k, Dv), lambda b, k: (b, k, 0)),  # Z
            pl.BlockSpec((Dq, NH), lambda b, k: (0, 0)),                   # Wq
            pl.BlockSpec((Dk, NH), lambda b, k: (0, 0)),                   # Wk
            pl.BlockSpec((Dv, NH), lambda b, k: (0, 0)),                   # Wv
            pl.BlockSpec((NH, NHp), lambda b, k: (0, 0)),                  # Wo (padded)
        ],
        out_specs=pl.BlockSpec((block_b, Tq, NHp), lambda b, k: (b, 0, 0)),
        scratch_shapes=[
            pltpu.VMEM((block_b * Tq, NH), jnp.float32),                   # Q (resident)
            pltpu.VMEM((num_heads * block_b, Tq, head_dim), jnp.float32),  # gated numerator
            pltpu.VMEM((num_heads * block_b, Tq, 1), jnp.float32),         # running max
            pltpu.VMEM((num_heads * block_b, Tq, 1), jnp.float32),         # running denom
        ],
        compiler_params=pltpu.CompilerParams(
            dimension_semantics=("parallel", "arbitrary"),
            vmem_limit_bytes=vmem_limit),
        cost_estimate=pl.CostEstimate(flops=int(flops),
                                      transcendentals=int(transcendentals),
                                      bytes_accessed=int(bytes_accessed)),
    )(x, y, z, wq, wk, wv, wo_p)

    return out if NHp == NH else out[..., :NH]


def reference_forward(x, y, z, rate, wq, wk, wv, wo, num_heads):
    """Pure-JAX reference mirroring the PyTorch forward (eval mode)."""
    B, Tq, _ = x.shape
    NH = wq.shape[1]
    hd = NH // num_heads

    def split(t, w):
        p = t @ w                                      # (B, T, NH)
        p = p.reshape(B, t.shape[1], num_heads, hd)
        return p.transpose(0, 2, 1, 3)                 # (B, H, T, hd)

    q, k, v = split(x, wq), split(y, wk), split(z, wv)
    s = jnp.einsum("bhqd,bhkd->bhqk", q, k) / math.sqrt(hd)
    p = jax.nn.softmax(s, axis=-1)
    att = jnp.where(jax.nn.sigmoid(s) > rate, p, 0.0)
    ctx = jnp.einsum("bhqk,bhkd->bhqd", att, v)
    ctx = ctx.transpose(0, 2, 1, 3).reshape(B, Tq, NH)
    return ctx @ wo


if __name__ == "__main__":
    # Small shapes consistent with the module's forward.
    B, Tq, Tk = 2, 8, 8
    query_size = key_size = value_size = 32
    num_hiddens, num_heads = 32, 4
    rate = 0.5

    key = jax.random.PRNGKey(0)
    kx, ky, kz, kq, kk, kv, ko = jax.random.split(key, 7)

    x = jax.random.normal(kx, (B, Tq, query_size), dtype=jnp.float32)
    y = jax.random.normal(ky, (B, Tk, key_size), dtype=jnp.float32)
    z = jax.random.normal(kz, (B, Tk, value_size), dtype=jnp.float32)

    def init(k, shape):
        return (jax.random.normal(k, shape, dtype=jnp.float32)
                / math.sqrt(shape[0]))

    wq = init(kq, (query_size, num_hiddens))
    wk = init(kk, (key_size, num_hiddens))
    wv = init(kv, (value_size, num_hiddens))
    wo = init(ko, (num_hiddens, num_hiddens))

    out = top_multi_attention(x, y, z, rate, wq, wk, wv, wo, num_heads)
    out = jax.block_until_ready(out)

    ref = reference_forward(x, y, z, rate, wq, wk, wv, wo, num_heads)
    assert out.shape == (B, Tq, num_hiddens)
    # Tolerance relaxed vs 1e-5 because the softmax denominator uses the EUP
    # approximate reciprocal (all accumulation is f32).
    np.testing.assert_allclose(np.asarray(out), np.asarray(ref),
                               rtol=1e-2, atol=1e-2)

    # bf16 MXU-operand path (v6e/v7x recommendation): smoke test only, since
    # gate entries with scores near logit(rate) may legitimately differ from
    # the f32 reference.
    out_bf16 = top_multi_attention(x, y, z, rate, wq, wk, wv, wo, num_heads,
                                   matmul_dtype=jnp.bfloat16)
    out_bf16 = jax.block_until_ready(out_bf16)
    assert out_bf16.shape == out.shape
    assert bool(jnp.all(jnp.isfinite(out_bf16)))

    print("KERNEL_OK")
</pallas_src>

<mosaic_0001>
module attributes {stable_mosaic.version = 11 : i64} {
  func.func @_top_attn_kernel(%arg0: i32, %arg1: i32, %arg2: memref<1x8x32xf32, #tpu.memory_space<vmem>>, %arg3: memref<1x8x32xf32, #tpu.memory_space<vmem>>, %arg4: memref<1x8x32xf32, #tpu.memory_space<vmem>>, %arg5: memref<32x32xf32, #tpu.memory_space<vmem>>, %arg6: memref<32x32xf32, #tpu.memory_space<vmem>>, %arg7: memref<32x32xf32, #tpu.memory_space<vmem>>, %arg8: memref<32x128xf32, #tpu.memory_space<vmem>>, %arg9: memref<1x8x128xf32, #tpu.memory_space<vmem>>, %arg10: memref<8x32xf32, #tpu.memory_space<vmem>>, %arg11: memref<4x8x8xf32, #tpu.memory_space<vmem>>, %arg12: memref<4x8x1xf32, #tpu.memory_space<vmem>>, %arg13: memref<4x8x1xf32, #tpu.memory_space<vmem>>) attributes {dimension_semantics = [#tpu.dimension_semantics<parallel>, #tpu.dimension_semantics<arbitrary>], iteration_bounds = array<i64: 2, 1>, scalar_prefetch = 0 : i64, scratch_operands = 4 : i64, tpu.core_type = #tpu.core_type<tc>, window_params = [{transform_indices = @transform_0, window_bounds = array<i64: 1, 8, 32>}, {transform_indices = @transform_1, window_bounds = array<i64: 1, 8, 32>}, {transform_indices = @transform_2, window_bounds = array<i64: 1, 8, 32>}, {pipeline_mode = #tpu.pipeline_mode<synchronous>, transform_indices = @transform_3, window_bounds = array<i64: 32, 32>}, {pipeline_mode = #tpu.pipeline_mode<synchronous>, transform_indices = @transform_4, window_bounds = array<i64: 32, 32>}, {pipeline_mode = #tpu.pipeline_mode<synchronous>, transform_indices = @transform_5, window_bounds = array<i64: 32, 32>}, {pipeline_mode = #tpu.pipeline_mode<synchronous>, transform_indices = @transform_6, window_bounds = array<i64: 32, 128>}, {transform_indices = @transform_7, window_bounds = array<i64: 1, 8, 128>}]} {
    %c0_i32 = arith.constant 0 : i32
    %0 = arith.cmpi eq, %arg1, %c0_i32 : i32
    %1 = arith.extui %0 : i1 to i32
    %c0_i32_0 = arith.constant 0 : i32
    %2 = arith.cmpi ne, %1, %c0_i32_0 : i32
    scf.if %2 {
      %c0_115 = arith.constant 0 : index
      %c0_116 = arith.constant 0 : index
      %c0_117 = arith.constant 0 : index
      %148 = vector.load %arg2[%c0_115, %c0_116, %c0_117] : memref<1x8x32xf32, #tpu.memory_space<vmem>>, vector<1x8x32xf32>
      %149 = vector.shape_cast %148 : vector<1x8x32xf32> to vector<8x32xf32>
      %c0_118 = arith.constant 0 : index
      %c0_119 = arith.constant 0 : index
      %150 = vector.load %arg5[%c0_118, %c0_119] : memref<32x32xf32, #tpu.memory_space<vmem>>, vector<32x32xf32>
      %cst_120 = arith.constant dense<0.000000e+00> : vector<8x32xf32>
      %151 = tpu.matmul %149, %150, %cst_120 {dimension_numbers = #tpu.dot_dimension_numbers<[1], [0], [0], [1], [0, 0, 1, 1], [], []>} : vector<8x32xf32>, vector<32x32xf32>, vector<8x32xf32> -> vector<8x32xf32>
      %c0_121 = arith.constant 0 : index
      %c0_122 = arith.constant 0 : index
      %152 = vector.load %arg10[%c0_121, %c0_122] : memref<8x32xf32, #tpu.memory_space<vmem>>, vector<8x32xf32>
      tpu.vector_store %arg10[%c0_121, %c0_122], %151 {strides = array<i32>} : memref<8x32xf32, #tpu.memory_space<vmem>>, vector<8x32xf32>,
      %cst_123 = arith.constant 0.000000e+00 : f32
      %153 = vector.broadcast %cst_123 : f32 to vector<4x8x8xf32>
      %c0_124 = arith.constant 0 : index
      %c0_125 = arith.constant 0 : index
      %c0_126 = arith.constant 0 : index
      %154 = vector.load %arg11[%c0_124, %c0_125, %c0_126] : memref<4x8x8xf32, #tpu.memory_space<vmem>>, vector<4x8x8xf32>
      tpu.vector_store %arg11[%c0_124, %c0_125, %c0_126], %153 {strides = array<i32>} : memref<4x8x8xf32, #tpu.memory_space<vmem>>, vector<4x8x8xf32>,
      %cst_127 = arith.constant 0xFF800000 : f32
      %155 = vector.broadcast %cst_127 : f32 to vector<4x8x1xf32>
      %c0_128 = arith.constant 0 : index
      %c0_129 = arith.constant 0 : index
      %c0_130 = arith.constant 0 : index
      %156 = vector.load %arg12[%c0_128, %c0_129, %c0_130] : memref<4x8x1xf32, #tpu.memory_space<vmem>>, vector<4x8x1xf32>
      tpu.vector_store %arg12[%c0_128, %c0_129, %c0_130], %155 {strides = array<i32>} : memref<4x8x1xf32, #tpu.memory_space<vmem>>, vector<4x8x1xf32>,
      %cst_131 = arith.constant 0.000000e+00 : f32
      %157 = vector.broadcast %cst_131 : f32 to vector<4x8x1xf32>
      %c0_132 = arith.constant 0 : index
      %c0_133 = arith.constant 0 : index
      %c0_134 = arith.constant 0 : index
      %158 = vector.load %arg13[%c0_132, %c0_133, %c0_134] : memref<4x8x1xf32, #tpu.memory_space<vmem>>, vector<4x8x1xf32>
      tpu.vector_store %arg13[%c0_132, %c0_133, %c0_134], %157 {strides = array<i32>} : memref<4x8x1xf32, #tpu.memory_space<vmem>>, vector<4x8x1xf32>,
    } else {
    }
    %c0 = arith.constant 0 : index
    %c0_1 = arith.constant 0 : index
    %c0_2 = arith.constant 0 : index
    %3 = vector.load %arg3[%c0, %c0_1, %c0_2] : memref<1x8x32xf32, #tpu.memory_space<vmem>>, vector<1x8x32xf32>
    %4 = vector.shape_cast %3 : vector<1x8x32xf32> to vector<8x32xf32>
    %c0_3 = arith.constant 0 : index
    %c0_4 = arith.constant 0 : index
    %c0_5 = arith.constant 0 : index
    %5 = vector.load %arg4[%c0_3, %c0_4, %c0_5] : memref<1x8x32xf32, #tpu.memory_space<vmem>>, vector<1x8x32xf32>
    %6 = vector.shape_cast %5 : vector<1x8x32xf32> to vector<8x32xf32>
    %c0_6 = arith.constant 0 : index
    %c0_7 = arith.constant 0 : index
    %7 = vector.load %arg6[%c0_6, %c0_7] : memref<32x32xf32, #tpu.memory_space<vmem>>, vector<32x32xf32>
    %cst = arith.constant dense<0.000000e+00> : vector<8x32xf32>
    %8 = tpu.matmul %4, %7, %cst {dimension_numbers = #tpu.dot_dimension_numbers<[1], [0], [0], [1], [0, 0, 1, 1], [], []>} : vector<8x32xf32>, vector<32x32xf32>, vector<8x32xf32> -> vector<8x32xf32>
    %9 = vector.shape_cast %8 : vector<8x32xf32> to vector<1x8x32xf32>
    %c0_8 = arith.constant 0 : index
    %c0_9 = arith.constant 0 : index
    %10 = vector.load %arg7[%c0_8, %c0_9] : memref<32x32xf32, #tpu.memory_space<vmem>>, vector<32x32xf32>
    %cst_10 = arith.constant dense<0.000000e+00> : vector<8x32xf32>
    %11 = tpu.matmul %6, %10, %cst_10 {dimension_numbers = #tpu.dot_dimension_numbers<[1], [0], [0], [1], [0, 0, 1, 1], [], []>} : vector<8x32xf32>, vector<32x32xf32>, vector<8x32xf32> -> vector<8x32xf32>
    %12 = vector.shape_cast %11 : vector<8x32xf32> to vector<1x8x32xf32>
    %c0_11 = arith.constant 0 : index
    %c0_12 = arith.constant 0 : index
    %13 = vector.load %arg10[%c0_11, %c0_12] : memref<8x32xf32, #tpu.memory_space<vmem>>, vector<8x8xf32>
    %14 = vector.shape_cast %13 : vector<8x8xf32> to vector<1x8x8xf32>
    %15 = vector.extract_strided_slice %9 {offsets = [0, 0, 0], sizes = [1, 8, 8], strides = [1, 1, 1]} : vector<1x8x32xf32> to vector<1x8x8xf32>
    %16 = vector.extract_strided_slice %12 {offsets = [0, 0, 0], sizes = [1, 8, 8], strides = [1, 1, 1]} : vector<1x8x32xf32> to vector<1x8x8xf32>
    "tpu.trace_start"() <{level = 10 : i32, message = "bqd,bkd->bqk"}> : () -> ()
    %cst_13 = arith.constant dense<0.000000e+00> : vector<1x8x8xf32>
    %17 = tpu.matmul %14, %15, %cst_13 {dimension_numbers = #tpu.dot_dimension_numbers<[2], [2], [1], [1], [0, 0, 0, 1, 1, 1], [0], [0]>} : vector<1x8x8xf32>, vector<1x8x8xf32>, vector<1x8x8xf32> -> vector<1x8x8xf32>
    "tpu.trace_stop"() : () -> ()
    %cst_14 = arith.constant 0.353553385 : f32
    %18 = vector.broadcast %cst_14 : f32 to vector<1x8x8xf32>
    %19 = arith.mulf %17, %18 : vector<1x8x8xf32>
    %c0_15 = arith.constant 0 : index
    %c0_16 = arith.constant 0 : index
    %c0_17 = arith.constant 0 : index
    %20 = vector.load %arg12[%c0_15, %c0_16, %c0_17] : memref<4x8x1xf32, #tpu.memory_space<vmem>>, vector<1x8x1xf32>
    %c0_18 = arith.constant 0 : index
    %c0_19 = arith.constant 0 : index
    %c0_20 = arith.constant 0 : index
    %21 = vector.load %arg13[%c0_18, %c0_19, %c0_20] : memref<4x8x1xf32, #tpu.memory_space<vmem>>, vector<1x8x1xf32>
    %cst_21 = arith.constant dense<0xFF800000> : vector<1x8xf32>
    %22 = vector.multi_reduction <maximumf>, %19, %cst_21 [2] : vector<1x8x8xf32> to vector<1x8xf32>
    %23 = vector.shape_cast %22 : vector<1x8xf32> to vector<1x8x1xf32>
    %24 = arith.maximumf %20, %23 : vector<1x8x1xf32>
    %25 = arith.subf %20, %24 : vector<1x8x1xf32>
    %26 = math.exp %25 : vector<1x8x1xf32>
    %27 = vector.broadcast %24 : vector<1x8x1xf32> to vector<1x8x8xf32>
    %28 = arith.subf %19, %27 : vector<1x8x8xf32>
    %29 = math.exp %28 : vector<1x8x8xf32>
    %30 = arith.mulf %26, %21 : vector<1x8x1xf32>
    %cst_22 = arith.constant dense<0.000000e+00> : vector<1x8xf32>
    %31 = vector.multi_reduction <add>, %29, %cst_22 [2] : vector<1x8x8xf32> to vector<1x8xf32>
    %32 = vector.shape_cast %31 : vector<1x8xf32> to vector<1x8x1xf32>
    %33 = arith.addf %30, %32 : vector<1x8x1xf32>
    %c0_23 = arith.constant 0 : index
    %c0_24 = arith.constant 0 : index
    %c0_25 = arith.constant 0 : index
    %34 = vector.load %arg13[%c0_23, %c0_24, %c0_25] : memref<4x8x1xf32, #tpu.memory_space<vmem>>, vector<1x8x1xf32>
    tpu.vector_store %arg13[%c0_23, %c0_24, %c0_25], %33 {strides = array<i32>} : memref<4x8x1xf32, #tpu.memory_space<vmem>>, vector<1x8x1xf32>,
    %c0_26 = arith.constant 0 : index
    %c0_27 = arith.constant 0 : index
    %c0_28 = arith.constant 0 : index
    %35 = vector.load %arg12[%c0_26, %c0_27, %c0_28] : memref<4x8x1xf32, #tpu.memory_space<vmem>>, vector<1x8x1xf32>
    tpu.vector_store %arg12[%c0_26, %c0_27, %c0_28], %24 {strides = array<i32>} : memref<4x8x1xf32, #tpu.memory_space<vmem>>, vector<1x8x1xf32>,
    %cst_29 = arith.constant 0.000000e+00 : f32
    %36 = vector.broadcast %cst_29 : f32 to vector<1x8x8xf32>
    %37 = arith.cmpf ogt, %19, %36 : vector<1x8x8xf32>
    %cst_30 = arith.constant 0.000000e+00 : f32
    %38 = vector.broadcast %cst_30 : f32 to vector<1x8x8xf32>
    %39 = arith.select %37, %29, %38 : vector<1x8x8xi1>, vector<1x8x8xf32>
    "tpu.trace_start"() <{level = 10 : i32, message = "bqk,bkd->bqd"}> : () -> ()
    %cst_31 = arith.constant dense<0.000000e+00> : vector<1x8x8xf32>
    %40 = tpu.matmul %39, %16, %cst_31 {dimension_numbers = #tpu.dot_dimension_numbers<[2], [1], [1], [2], [0, 0, 0, 1, 1, 2], [0], [0]>} : vector<1x8x8xf32>, vector<1x8x8xf32>, vector<1x8x8xf32> -> vector<1x8x8xf32>
    "tpu.trace_stop"() : () -> ()
    %c0_32 = arith.constant 0 : index
    %c0_33 = arith.constant 0 : index
    %c0_34 = arith.constant 0 : index
    %41 = vector.load %arg11[%c0_32, %c0_33, %c0_34] : memref<4x8x8xf32, #tpu.memory_space<vmem>>, vector<1x8x8xf32>
    %42 = vector.broadcast %26 : vector<1x8x1xf32> to vector<1x8x8xf32>
    %43 = arith.mulf %42, %41 : vector<1x8x8xf32>
    %44 = arith.addf %43, %40 : vector<1x8x8xf32>
    %c0_35 = arith.constant 0 : index
    %c0_36 = arith.constant 0 : index
    %c0_37 = arith.constant 0 : index
    %45 = vector.load %arg11[%c0_35, %c0_36, %c0_37] : memref<4x8x8xf32, #tpu.memory_space<vmem>>, vector<1x8x8xf32>
    tpu.vector_store %arg11[%c0_35, %c0_36, %c0_37], %44 {strides = array<i32>} : memref<4x8x8xf32, #tpu.memory_space<vmem>>, vector<1x8x8xf32>,
    %c0_38 = arith.constant 0 : index
    %c8 = arith.constant 8 : index
    %46 = vector.load %arg10[%c0_38, %c8] : memref<8x32xf32, #tpu.memory_space<vmem>>, vector<8x8xf32>
    %47 = vector.shape_cast %46 : vector<8x8xf32> to vector<1x8x8xf32>
    %48 = vector.extract_strided_slice %9 {offsets = [0, 0, 8], sizes = [1, 8, 8], strides = [1, 1, 1]} : vector<1x8x32xf32> to vector<1x8x8xf32>
    %49 = vector.extract_strided_slice %12 {offsets = [0, 0, 8], sizes = [1, 8, 8], strides = [1, 1, 1]} : vector<1x8x32xf32> to vector<1x8x8xf32>
    "tpu.trace_start"() <{level = 10 : i32, message = "bqd,bkd->bqk"}> : () -> ()
    %cst_39 = arith.constant dense<0.000000e+00> : vector<1x8x8xf32>
    %50 = tpu.matmul %47, %48, %cst_39 {dimension_numbers = #tpu.dot_dimension_numbers<[2], [2], [1], [1], [0, 0, 0, 1, 1, 1], [0], [0]>} : vector<1x8x8xf32>, vector<1x8x8xf32>, vector<1x8x8xf32> -> vector<1x8x8xf32>
    "tpu.trace_stop"() : () -> ()
    %cst_40 = arith.constant 0.353553385 : f32
    %51 = vector.broadcast %cst_40 : f32 to vector<1x8x8xf32>
    %52 = arith.mulf %50, %51 : vector<1x8x8xf32>
    %c1 = arith.constant 1 : index
    %c0_41 = arith.constant 0 : index
    %c0_42 = arith.constant 0 : index
    %53 = vector.load %arg12[%c1, %c0_41, %c0_42] : memref<4x8x1xf32, #tpu.memory_space<vmem>>, vector<1x8x1xf32>
    %c1_43 = arith.constant 1 : index
    %c0_44 = arith.constant 0 : index
    %c0_45 = arith.constant 0 : index
    %54 = vector.load %arg13[%c1_43, %c0_44, %c0_45] : memref<4x8x1xf32, #tpu.memory_space<vmem>>, vector<1x8x1xf32>
    %cst_46 = arith.constant dense<0xFF800000> : vector<1x8xf32>
    %55 = vector.multi_reduction <maximumf>, %52, %cst_46 [2] : vector<1x8x8xf32> to vector<1x8xf32>
    %56 = vector.shape_cast %55 : vector<1x8xf32> to vector<1x8x1xf32>
    %57 = arith.maximumf %53, %56 : vector<1x8x1xf32>
    %58 = arith.subf %53, %57 : vector<1x8x1xf32>
    %59 = math.exp %58 : vector<1x8x1xf32>
    %60 = vector.broadcast %57 : vector<1x8x1xf32> to vector<1x8x8xf32>
    %61 = arith.subf %52, %60 : vector<1x8x8xf32>
    %62 = math.exp %61 : vector<1x8x8xf32>
    %63 = arith.mulf %59, %54 : vector<1x8x1xf32>
    %cst_47 = arith.constant dense<0.000000e+00> : vector<1x8xf32>
    %64 = vector.multi_reduction <add>, %62, %cst_47 [2] : vector<1x8x8xf32> to vector<1x8xf32>
    %65 = vector.shape_cast %64 : vector<1x8xf32> to vector<1x8x1xf32>
    %66 = arith.addf %63, %65 : vector<1x8x1xf32>
    %c1_48 = arith.constant 1 : index
    %c0_49 = arith.constant 0 : index
    %c0_50 = arith.constant 0 : index
    %67 = vector.load %arg13[%c1_48, %c0_49, %c0_50] : memref<4x8x1xf32, #tpu.memory_space<vmem>>, vector<1x8x1xf32>
    tpu.vector_store %arg13[%c1_48, %c0_49, %c0_50], %66 {strides = array<i32>} : memref<4x8x1xf32, #tpu.memory_space<vmem>>, vector<1x8x1xf32>,
    %c1_51 = arith.constant 1 : index
    %c0_52 = arith.constant 0 : index
    %c0_53 = arith.constant 0 : index
    %68 = vector.load %arg12[%c1_51, %c0_52, %c0_53] : memref<4x8x1xf32, #tpu.memory_space<vmem>>, vector<1x8x1xf32>
    tpu.vector_store %arg12[%c1_51, %c0_52, %c0_53], %57 {strides = array<i32>} : memref<4x8x1xf32, #tpu.memory_space<vmem>>, vector<1x8x1xf32>,
    %cst_54 = arith.constant 0.000000e+00 : f32
    %69 = vector.broadcast %cst_54 : f32 to vector<1x8x8xf32>
    %70 = arith.cmpf ogt, %52, %69 : vector<1x8x8xf32>
    %cst_55 = arith.constant 0.000000e+00 : f32
    %71 = vector.broadcast %cst_55 : f32 to vector<1x8x8xf32>
    %72 = arith.select %70, %62, %71 : vector<1x8x8xi1>, vector<1x8x8xf32>
    "tpu.trace_start"() <{level = 10 : i32, message = "bqk,bkd->bqd"}> : () -> ()
    %cst_56 = arith.constant dense<0.000000e+00> : vector<1x8x8xf32>
    %73 = tpu.matmul %72, %49, %cst_56 {dimension_numbers = #tpu.dot_dimension_numbers<[2], [1], [1], [2], [0, 0, 0, 1, 1, 2], [0], [0]>} : vector<1x8x8xf32>, vector<1x8x8xf32>, vector<1x8x8xf32> -> vector<1x8x8xf32>
    "tpu.trace_stop"() : () -> ()
    %c1_57 = arith.constant 1 : index
    %c0_58 = arith.constant 0 : index
    %c0_59 = arith.constant 0 : index
    %74 = vector.load %arg11[%c1_57, %c0_58, %c0_59] : memref<4x8x8xf32, #tpu.memory_space<vmem>>, vector<1x8x8xf32>
    %75 = vector.broadcast %59 : vector<1x8x1xf32> to vector<1x8x8xf32>
    %76 = arith.mulf %75, %74 : vector<1x8x8xf32>
    %77 = arith.addf %76, %73 : vector<1x8x8xf32>
    %c1_60 = arith.constant 1 : index
    %c0_61 = arith.constant 0 : index
    %c0_62 = arith.constant 0 : index
    %78 = vector.load %arg11[%c1_60, %c0_61, %c0_62] : memref<4x8x8xf32, #tpu.memory_space<vmem>>, vector<1x8x8xf32>
    tpu.vector_store %arg11[%c1_60, %c0_61, %c0_62], %77 {strides = array<i32>} : memref<4x8x8xf32, #tpu.memory_space<vmem>>, vector<1x8x8xf32>,
    %c0_63 = arith.constant 0 : index
    %c16 = arith.constant 16 : index
    %79 = vector.load %arg10[%c0_63, %c16] : memref<8x32xf32, #tpu.memory_space<vmem>>, vector<8x8xf32>
    %80 = vector.shape_cast %79 : vector<8x8xf32> to vector<1x8x8xf32>
    %81 = vector.extract_strided_slice %9 {offsets = [0, 0, 16], sizes = [1, 8, 8], strides = [1, 1, 1]} : vector<1x8x32xf32> to vector<1x8x8xf32>
    %82 = vector.extract_strided_slice %12 {offsets = [0, 0, 16], sizes = [1, 8, 8], strides = [1, 1, 1]} : vector<1x8x32xf32> to vector<1x8x8xf32>
    "tpu.trace_start"() <{level = 10 : i32, message = "bqd,bkd->bqk"}> : () -> ()
    %cst_64 = arith.constant dense<0.000000e+00> : vector<1x8x8xf32>
    %83 = tpu.matmul %80, %81, %cst_64 {dimension_numbers = #tpu.dot_dimension_numbers<[2], [2], [1], [1], [0, 0, 0, 1, 1, 1], [0], [0]>} : vector<1x8x8xf32>, vector<1x8x8xf32>, vector<1x8x8xf32> -> vector<1x8x8xf32>
    "tpu.trace_stop"() : () -> ()
    %cst_65 = arith.constant 0.353553385 : f32
    %84 = vector.broadcast %cst_65 : f32 to vector<1x8x8xf32>
    %85 = arith.mulf %83, %84 : vector<1x8x8xf32>
    %c2 = arith.constant 2 : index
    %c0_66 = arith.constant 0 : index
    %c0_67 = arith.constant 0 : index
    %86 = vector.load %arg12[%c2, %c0_66, %c0_67] : memref<4x8x1xf32, #tpu.memory_space<vmem>>, vector<1x8x1xf32>
    %c2_68 = arith.constant 2 : index
    %c0_69 = arith.constant 0 : index
    %c0_70 = arith.constant 0 : index
    %87 = vector.load %arg13[%c2_68, %c0_69, %c0_70] : memref<4x8x1xf32, #tpu.memory_space<vmem>>, vector<1x8x1xf32>
    %cst_71 = arith.constant dense<0xFF800000> : vector<1x8xf32>
    %88 = vector.multi_reduction <maximumf>, %85, %cst_71 [2] : vector<1x8x8xf32> to vector<1x8xf32>
    %89 = vector.shape_cast %88 : vector<1x8xf32> to vector<1x8x1xf32>
    %90 = arith.maximumf %86, %89 : vector<1x8x1xf32>
    %91 = arith.subf %86, %90 : vector<1x8x1xf32>
    %92 = math.exp %91 : vector<1x8x1xf32>
    %93 = vector.broadcast %90 : vector<1x8x1xf32> to vector<1x8x8xf32>
    %94 = arith.subf %85, %93 : vector<1x8x8xf32>
    %95 = math.exp %94 : vector<1x8x8xf32>
    %96 = arith.mulf %92, %87 : vector<1x8x1xf32>
    %cst_72 = arith.constant dense<0.000000e+00> : vector<1x8xf32>
    %97 = vector.multi_reduction <add>, %95, %cst_72 [2] : vector<1x8x8xf32> to vector<1x8xf32>
    %98 = vector.shape_cast %97 : vector<1x8xf32> to vector<1x8x1xf32>
    %99 = arith.addf %96, %98 : vector<1x8x1xf32>
    %c2_73 = arith.constant 2 : index
    %c0_74 = arith.constant 0 : index
    %c0_75 = arith.constant 0 : index
    %100 = vector.load %arg13[%c2_73, %c0_74, %c0_75] : memref<4x8x1xf32, #tpu.memory_space<vmem>>, vector<1x8x1xf32>
    tpu.vector_store %arg13[%c2_73, %c0_74, %c0_75], %99 {strides = array<i32>} : memref<4x8x1xf32, #tpu.memory_space<vmem>>, vector<1x8x1xf32>,
    %c2_76 = arith.constant 2 : index
    %c0_77 = arith.constant 0 : index
    %c0_78 = arith.constant 0 : index
    %101 = vector.load %arg12[%c2_76, %c0_77, %c0_78] : memref<4x8x1xf32, #tpu.memory_space<vmem>>, vector<1x8x1xf32>
    tpu.vector_store %arg12[%c2_76, %c0_77, %c0_78], %90 {strides = array<i32>} : memref<4x8x1xf32, #tpu.memory_space<vmem>>, vector<1x8x1xf32>,
    %cst_79 = arith.constant 0.000000e+00 : f32
    %102 = vector.broadcast %cst_79 : f32 to vector<1x8x8xf32>
    %103 = arith.cmpf ogt, %85, %102 : vector<1x8x8xf32>
    %cst_80 = arith.constant 0.000000e+00 : f32
    %104 = vector.broadcast %cst_80 : f32 to vector<1x8x8xf32>
    %105 = arith.select %103, %95, %104 : vector<1x8x8xi1>, vector<1x8x8xf32>
    "tpu.trace_start"() <{level = 10 : i32, message = "bqk,bkd->bqd"}> : () -> ()
    %cst_81 = arith.constant dense<0.000000e+00> : vector<1x8x8xf32>
    %106 = tpu.matmul %105, %82, %cst_81 {dimension_numbers = #tpu.dot_dimension_numbers<[2], [1], [1], [2], [0, 0, 0, 1, 1, 2], [0], [0]>} : vector<1x8x8xf32>, vector<1x8x8xf32>, vector<1x8x8xf32> -> vector<1x8x8xf32>
    "tpu.trace_stop"() : () -> ()
    %c2_82 = arith.constant 2 : index
    %c0_83 = arith.constant 0 : index
    %c0_84 = arith.constant 0 : index
    %107 = vector.load %arg11[%c2_82, %c0_83, %c0_84] : memref<4x8x8xf32, #tpu.memory_space<vmem>>, vector<1x8x8xf32>
    %108 = vector.broadcast %92 : vector<1x8x1xf32> to vector<1x8x8xf32>
    %109 = arith.mulf %108, %107 : vector<1x8x8xf32>
    %110 = arith.addf %109, %106 : vector<1x8x8xf32>
    %c2_85 = arith.constant 2 : index
    %c0_86 = arith.constant 0 : index
    %c0_87 = arith.constant 0 : index
    %111 = vector.load %arg11[%c2_85, %c0_86, %c0_87] : memref<4x8x8xf32, #tpu.memory_space<vmem>>, vector<1x8x8xf32>
    tpu.vector_store %arg11[%c2_85, %c0_86, %c0_87], %110 {strides = array<i32>} : memref<4x8x8xf32, #tpu.memory_space<vmem>>, vector<1x8x8xf32>,
    %c0_88 = arith.constant 0 : index
    %c24 = arith.constant 24 : index
    %112 = vector.load %arg10[%c0_88, %c24] : memref<8x32xf32, #tpu.memory_space<vmem>>, vector<8x8xf32>
    %113 = vector.shape_cast %112 : vector<8x8xf32> to vector<1x8x8xf32>
    %114 = vector.extract_strided_slice %9 {offsets = [0, 0, 24], sizes = [1, 8, 8], strides = [1, 1, 1]} : vector<1x8x32xf32> to vector<1x8x8xf32>
    %115 = vector.extract_strided_slice %12 {offsets = [0, 0, 24], sizes = [1, 8, 8], strides = [1, 1, 1]} : vector<1x8x32xf32> to vector<1x8x8xf32>
    "tpu.trace_start"() <{level = 10 : i32, message = "bqd,bkd->bqk"}> : () -> ()
    %cst_89 = arith.constant dense<0.000000e+00> : vector<1x8x8xf32>
    %116 = tpu.matmul %113, %114, %cst_89 {dimension_numbers = #tpu.dot_dimension_numbers<[2], [2], [1], [1], [0, 0, 0, 1, 1, 1], [0], [0]>} : vector<1x8x8xf32>, vector<1x8x8xf32>, vector<1x8x8xf32> -> vector<1x8x8xf32>
    "tpu.trace_stop"() : () -> ()
    %cst_90 = arith.constant 0.353553385 : f32
    %117 = vector.broadcast %cst_90 : f32 to vector<1x8x8xf32>
    %118 = arith.mulf %116, %117 : vector<1x8x8xf32>
    %c3 = arith.constant 3 : index
    %c0_91 = arith.constant 0 : index
    %c0_92 = arith.constant 0 : index
    %119 = vector.load %arg12[%c3, %c0_91, %c0_92] : memref<4x8x1xf32, #tpu.memory_space<vmem>>, vector<1x8x1xf32>
    %c3_93 = arith.constant 3 : index
    %c0_94 = arith.constant 0 : index
    %c0_95 = arith.constant 0 : index
    %120 = vector.load %arg13[%c3_93, %c0_94, %c0_95] : memref<4x8x1xf32, #tpu.memory_space<vmem>>, vector<1x8x1xf32>
    %cst_96 = arith.constant dense<0xFF800000> : vector<1x8xf32>
    %121 = vector.multi_reduction <maximumf>, %118, %cst_96 [2] : vector<1x8x8xf32> to vector<1x8xf32>
    %122 = vector.shape_cast %121 : vector<1x8xf32> to vector<1x8x1xf32>
    %123 = arith.maximumf %119, %122 : vector<1x8x1xf32>
    %124 = arith.subf %119, %123 : vector<1x8x1xf32>
    %125 = math.exp %124 : vector<1x8x1xf32>
    %126 = vector.broadcast %123 : vector<1x8x1xf32> to vector<1x8x8xf32>
    %127 = arith.subf %118, %126 : vector<1x8x8xf32>
    %128 = math.exp %127 : vector<1x8x8xf32>
    %129 = arith.mulf %125, %120 : vector<1x8x1xf32>
    %cst_97 = arith.constant dense<0.000000e+00> : vector<1x8xf32>
    %130 = vector.multi_reduction <add>, %128, %cst_97 [2] : vector<1x8x8xf32> to vector<1x8xf32>
    %131 = vector.shape_cast %130 : vector<1x8xf32> to vector<1x8x1xf32>
    %132 = arith.addf %129, %131 : vector<1x8x1xf32>
    %c3_98 = arith.constant 3 : index
    %c0_99 = arith.constant 0 : index
    %c0_100 = arith.constant 0 : index
    %133 = vector.load %arg13[%c3_98, %c0_99, %c0_100] : memref<4x8x1xf32, #tpu.memory_space<vmem>>, vector<1x8x1xf32>
    tpu.vector_store %arg13[%c3_98, %c0_99, %c0_100], %132 {strides = array<i32>} : memref<4x8x1xf32, #tpu.memory_space<vmem>>, vector<1x8x1xf32>,
    %c3_101 = arith.constant 3 : index
    %c0_102 = arith.constant 0 : index
    %c0_103 = arith.constant 0 : index
    %134 = vector.load %arg12[%c3_101, %c0_102, %c0_103] : memref<4x8x1xf32, #tpu.memory_space<vmem>>, vector<1x8x1xf32>
    tpu.vector_store %arg12[%c3_101, %c0_102, %c0_103], %123 {strides = array<i32>} : memref<4x8x1xf32, #tpu.memory_space<vmem>>, vector<1x8x1xf32>,
    %cst_104 = arith.constant 0.000000e+00 : f32
    %135 = vector.broadcast %cst_104 : f32 to vector<1x8x8xf32>
    %136 = arith.cmpf ogt, %118, %135 : vector<1x8x8xf32>
    %cst_105 = arith.constant 0.000000e+00 : f32
    %137 = vector.broadcast %cst_105 : f32 to vector<1x8x8xf32>
    %138 = arith.select %136, %128, %137 : vector<1x8x8xi1>, vector<1x8x8xf32>
    "tpu.trace_start"() <{level = 10 : i32, message = "bqk,bkd->bqd"}> : () -> ()
    %cst_106 = arith.constant dense<0.000000e+00> : vector<1x8x8xf32>
    %139 = tpu.matmul %138, %115, %cst_106 {dimension_numbers = #tpu.dot_dimension_numbers<[2], [1], [1], [2], [0, 0, 0, 1, 1, 2], [0], [0]>} : vector<1x8x8xf32>, vector<1x8x8xf32>, vector<1x8x8xf32> -> vector<1x8x8xf32>
    "tpu.trace_stop"() : () -> ()
    %c3_107 = arith.constant 3 : index
    %c0_108 = arith.constant 0 : index
    %c0_109 = arith.constant 0 : index
    %140 = vector.load %arg11[%c3_107, %c0_108, %c0_109] : memref<4x8x8xf32, #tpu.memory_space<vmem>>, vector<1x8x8xf32>
    %141 = vector.broadcast %125 : vector<1x8x1xf32> to vector<1x8x8xf32>
    %142 = arith.mulf %141, %140 : vector<1x8x8xf32>
    %143 = arith.addf %142, %139 : vector<1x8x8xf32>
    %c3_110 = arith.constant 3 : index
    %c0_111 = arith.constant 0 : index
    %c0_112 = arith.constant 0 : index
    %144 = vector.load %arg11[%c3_110, %c0_111, %c0_112] : memref<4x8x8xf32, #tpu.memory_space<vmem>>, vector<1x8x8xf32>
    tpu.vector_store %arg11[%c3_110, %c0_111, %c0_112], %143 {strides = array<i32>} : memref<4x8x8xf32, #tpu.memory_space<vmem>>, vector<1x8x8xf32>,
    %c0_i32_113 = arith.constant 0 : i32
    %145 = arith.cmpi eq, %arg1, %c0_i32_113 : i32
    %146 = arith.extui %145 : i1 to i32
    %c0_i32_114 = arith.constant 0 : i32
    %147 = arith.cmpi ne, %146, %c0_i32_114 : i32
    scf.if %147 {
      %cst_115 = arith.constant 0.000000e+00 : f32
      %148 = vector.broadcast %cst_115 : f32 to vector<8x128xf32>
      %c0_116 = arith.constant 0 : index
      %c0_117 = arith.constant 0 : index
      %c0_118 = arith.constant 0 : index
      %149 = vector.load %arg13[%c0_116, %c0_117, %c0_118] : memref<4x8x1xf32, #tpu.memory_space<vmem>>, vector<1x8x1xf32>
      %150 = tpu.reciprocal %149 {approx = true} : vector<1x8x1xf32> -> vector<1x8x1xf32>
      %c0_119 = arith.constant 0 : index
      %c0_120 = arith.constant 0 : index
      %c0_121 = arith.constant 0 : index
      %151 = vector.load %arg11[%c0_119, %c0_120, %c0_121] : memref<4x8x8xf32, #tpu.memory_space<vmem>>, vector<1x8x8xf32>
      %152 = vector.broadcast %150 : vector<1x8x1xf32> to vector<1x8x8xf32>
      %153 = arith.mulf %151, %152 : vector<1x8x8xf32>
      %154 = vector.shape_cast %153 : vector<1x8x8xf32> to vector<8x8xf32>
      %c0_122 = arith.constant 0 : index
      %c0_123 = arith.constant 0 : index
      %155 = vector.load %arg8[%c0_122, %c0_123] : memref<32x128xf32, #tpu.memory_space<vmem>>, vector<8x128xf32>
      %cst_124 = arith.constant dense<0.000000e+00> : vector<8x128xf32>
      %156 = tpu.matmul %154, %155, %cst_124 {dimension_numbers = #tpu.dot_dimension_numbers<[1], [0], [0], [1], [0, 0, 1, 1], [], []>} : vector<8x8xf32>, vector<8x128xf32>, vector<8x128xf32> -> vector<8x128xf32>
      %157 = arith.addf %148, %156 : vector<8x128xf32>
      %c1_125 = arith.constant 1 : index
      %c0_126 = arith.constant 0 : index
      %c0_127 = arith.constant 0 : index
      %158 = vector.load %arg13[%c1_125, %c0_126, %c0_127] : memref<4x8x1xf32, #tpu.memory_space<vmem>>, vector<1x8x1xf32>
      %159 = tpu.reciprocal %158 {approx = true} : vector<1x8x1xf32> -> vector<1x8x1xf32>
      %c1_128 = arith.constant 1 : index
      %c0_129 = arith.constant 0 : index
      %c0_130 = arith.constant 0 : index
      %160 = vector.load %arg11[%c1_128, %c0_129, %c0_130] : memref<4x8x8xf32, #tpu.memory_space<vmem>>, vector<1x8x8xf32>
      %161 = vector.broadcast %159 : vector<1x8x1xf32> to vector<1x8x8xf32>
      %162 = arith.mulf %160, %161 : vector<1x8x8xf32>
      %163 = vector.shape_cast %162 : vector<1x8x8xf32> to vector<8x8xf32>
      %c8_131 = arith.constant 8 : index
      %c0_132 = arith.constant 0 : index
      %164 = vector.load %arg8[%c8_131, %c0_132] : memref<32x128xf32, #tpu.memory_space<vmem>>, vector<8x128xf32>
      %cst_133 = arith.constant dense<0.000000e+00> : vector<8x128xf32>
      %165 = tpu.matmul %163, %164, %cst_133 {dimension_numbers = #tpu.dot_dimension_numbers<[1], [0], [0], [1], [0, 0, 1, 1], [], []>} : vector<8x8xf32>, vector<8x128xf32>, vector<8x128xf32> -> vector<8x128xf32>
      %166 = arith.addf %157, %165 : vector<8x128xf32>
      %c2_134 = arith.constant 2 : index
      %c0_135 = arith.constant 0 : index
      %c0_136 = arith.constant 0 : index
      %167 = vector.load %arg13[%c2_134, %c0_135, %c0_136] : memref<4x8x1xf32, #tpu.memory_space<vmem>>, vector<1x8x1xf32>
      %168 = tpu.reciprocal %167 {approx = true} : vector<1x8x1xf32> -> vector<1x8x1xf32>
      %c2_137 = arith.constant 2 : index
      %c0_138 = arith.constant 0 : index
      %c0_139 = arith.constant 0 : index
      %169 = vector.load %arg11[%c2_137, %c0_138, %c0_139] : memref<4x8x8xf32, #tpu.memory_space<vmem>>, vector<1x8x8xf32>
      %170 = vector.broadcast %168 : vector<1x8x1xf32> to vector<1x8x8xf32>
      %171 = arith.mulf %169, %170 : vector<1x8x8xf32>
      %172 = vector.shape_cast %171 : vector<1x8x8xf32> to vector<8x8xf32>
      %c16_140 = arith.constant 16 : index
      %c0_141 = arith.constant 0 : index
      %173 = vector.load %arg8[%c16_140, %c0_141] : memref<32x128xf32, #tpu.memory_space<vmem>>, vector<8x128xf32>
      %cst_142 = arith.constant dense<0.000000e+00> : vector<8x128xf32>
      %174 = tpu.matmul %172, %173, %cst_142 {dimension_numbers = #tpu.dot_dimension_numbers<[1], [0], [0], [1], [0, 0, 1, 1], [], []>} : vector<8x8xf32>, vector<8x128xf32>, vector<8x128xf32> -> vector<8x128xf32>
      %175 = arith.addf %166, %174 : vector<8x128xf32>
      %c3_143 = arith.constant 3 : index
      %c0_144 = arith.constant 0 : index
      %c0_145 = arith.constant 0 : index
      %176 = vector.load %arg13[%c3_143, %c0_144, %c0_145] : memref<4x8x1xf32, #tpu.memory_space<vmem>>, vector<1x8x1xf32>
      %177 = tpu.reciprocal %176 {approx = true} : vector<1x8x1xf32> -> vector<1x8x1xf32>
      %c3_146 = arith.constant 3 : index
      %c0_147 = arith.constant 0 : index
      %c0_148 = arith.constant 0 : index
      %178 = vector.load %arg11[%c3_146, %c0_147, %c0_148] : memref<4x8x8xf32, #tpu.memory_space<vmem>>, vector<1x8x8xf32>
      %179 = vector.broadcast %177 : vector<1x8x1xf32> to vector<1x8x8xf32>
      %180 = arith.mulf %178, %179 : vector<1x8x8xf32>
      %181 = vector.shape_cast %180 : vector<1x8x8xf32> to vector<8x8xf32>
      %c24_149 = arith.constant 24 : index
      %c0_150 = arith.constant 0 : index
      %182 = vector.load %arg8[%c24_149, %c0_150] : memref<32x128xf32, #tpu.memory_space<vmem>>, vector<8x128xf32>
      %cst_151 = arith.constant dense<0.000000e+00> : vector<8x128xf32>
      %183 = tpu.matmul %181, %182, %cst_151 {dimension_numbers = #tpu.dot_dimension_numbers<[1], [0], [0], [1], [0, 0, 1, 1], [], []>} : vector<8x8xf32>, vector<8x128xf32>, vector<8x128xf32> -> vector<8x128xf32>
      %184 = arith.addf %175, %183 : vector<8x128xf32>
      %185 = vector.shape_cast %184 : vector<8x128xf32> to vector<1x8x128xf32>
      %c0_152 = arith.constant 0 : index
      %c0_153 = arith.constant 0 : index
      %c0_154 = arith.constant 0 : index
      %186 = vector.load %arg9[%c0_152, %c0_153, %c0_154] : memref<1x8x128xf32, #tpu.memory_space<vmem>>, vector<1x8x128xf32>
      tpu.vector_store %arg9[%c0_152, %c0_153, %c0_154], %185 {strides = array<i32>} : memref<1x8x128xf32, #tpu.memory_space<vmem>>, vector<1x8x128xf32>,
    } else {
    }
    return
  }
  func.func @transform_0(%arg0: i32, %arg1: i32) -> (i32, i32, i32) {
    %c0_i32 = arith.constant 0 : i32
    %c0_i32_0 = arith.constant 0 : i32
    %c0_i32_1 = arith.constant 0 : i32
    return %arg0, %c0_i32, %c0_i32_0 : i32, i32, i32
  }
  func.func @transform_1(%arg0: i32, %arg1: i32) -> (i32, i32, i32) {
    %c0_i32 = arith.constant 0 : i32
    %c0_i32_0 = arith.constant 0 : i32
    return %arg0, %arg1, %c0_i32 : i32, i32, i32
  }
  func.func @transform_2(%arg0: i32, %arg1: i32) -> (i32, i32, i32) {
    %c0_i32 = arith.constant 0 : i32
    %c0_i32_0 = arith.constant 0 : i32
    return %arg0, %arg1, %c0_i32 : i32, i32, i32
  }
  func.func @transform_3(%arg0: i32, %arg1: i32) -> (i32, i32) {
    %c0_i32 = arith.constant 0 : i32
    %c0_i32_0 = arith.constant 0 : i32
    %c0_i32_1 = arith.constant 0 : i32
    return %c0_i32, %c0_i32_0 : i32, i32
  }
  func.func @transform_4(%arg0: i32, %arg1: i32) -> (i32, i32) {
    %c0_i32 = arith.constant 0 : i32
    %c0_i32_0 = arith.constant 0 : i32
    %c0_i32_1 = arith.constant 0 : i32
    return %c0_i32, %c0_i32_0 : i32, i32
  }
  func.func @transform_5(%arg0: i32, %arg1: i32) -> (i32, i32) {
    %c0_i32 = arith.constant 0 : i32
    %c0_i32_0 = arith.constant 0 : i32
    %c0_i32_1 = arith.constant 0 : i32
    return %c0_i32, %c0_i32_0 : i32, i32
  }
  func.func @transform_6(%arg0: i32, %arg1: i32) -> (i32, i32) {
    %c0_i32 = arith.constant 0 : i32
    %c0_i32_0 = arith.constant 0 : i32
    %c0_i32_1 = arith.constant 0 : i32
    return %c0_i32, %c0_i32_0 : i32, i32
  }
  func.func @transform_7(%arg0: i32, %arg1: i32) -> (i32, i32, i32) {
    %c0_i32 = arith.constant 0 : i32
    %c0_i32_0 = arith.constant 0 : i32
    %c0_i32_1 = arith.constant 0 : i32
    return %arg0, %c0_i32, %c0_i32_0 : i32, i32, i32
  }
}

</mosaic_0001>

<llo_original>
// kernel: tpu_custom_call.1
$region0: #{tpu_custom_call.1}
  #allocation0 [shape = 'u32[]', space=smem, size = 0x4, offset = 0x4, fixed_abs, tag = 'smem constant byte address 0x4 - core index']
  #allocation1 [shape = 'u32[144,128]{1,0:T(1,128)}', space=vmem, size = 0x12000, scoped, tag = 'internal scratch']
  #allocation2 [shape = 'f32[8,32]{1,0:T(8,128)}', space=vmem, size = 0x1000, scoped, tag = 'scratch operand']
  #allocation3 [shape = 'f32[4,8,8]{2,1,0:T(8,128)}', space=vmem, size = 0x4000, scoped, tag = 'scratch operand']
  #allocation4 [shape = 'f32[4,8,1]{2,1,0:T(8,128)}', space=vmem, size = 0x4000, scoped, tag = 'scratch operand']
  #allocation5 [shape = 'f32[4,8,1]{2,1,0:T(8,128)}', space=vmem, size = 0x4000, scoped, tag = 'scratch operand']
  %s0 = inlined_call_operand.hbm [shape: f32[2,8,32], index: 0, kind: input, shape index: {}]
  %s1 = inlined_call_operand.hbm [shape: f32[2,8,32], index: 1, kind: input, shape index: {}]
  %s2 = inlined_call_operand.hbm [shape: f32[2,8,32], index: 2, kind: input, shape index: {}]
  %s3 = inlined_call_operand.hbm [shape: f32[32,32], index: 3, kind: input, shape index: {}]
  %s4 = inlined_call_operand.hbm [shape: f32[32,32], index: 4, kind: input, shape index: {}]
  %s5 = inlined_call_operand.hbm [shape: f32[32,32], index: 5, kind: input, shape index: {}]
  %s6 = inlined_call_operand.hbm [shape: f32[32,128], index: 6, kind: input, shape index: {}]
  %s7 = inlined_call_operand.hbm [shape: f32[2,8,128], index: 7, kind: output, shape index: {}]
  %s8 = sld [smem:[#allocation0]]
  $region97: #{tpu_custom_call.1} parent=0
    _
  %s10 = ssub.s32 1, %s8
  %s11 = scalar_select 0, %s10, %s8
  $region1: #{tpu_custom_call.1} parent=0
    #allocation6 [shape = 'u8[8192]{0}', space=vmem, size = 0x2000, scoped, tag = 'input window, operand 0']
    #allocation7 [shape = 's32[2]{0}', space=sflag, size = 0x8, scoped, tag = 'scoped memory for tpu_custom_call.1']
    #allocation8 [shape = 's32[2]{0}', space=sflag, size = 0x8, scoped, tag = 'scoped memory for tpu_custom_call.1']
    #allocation9 [shape = 'u8[8192]{0}', space=vmem, size = 0x2000, scoped, tag = 'input window, operand 1']
    #allocation10 [shape = 's32[2]{0}', space=sflag, size = 0x8, scoped, tag = 'scoped memory for tpu_custom_call.1']
    #allocation11 [shape = 'u8[8192]{0}', space=vmem, size = 0x2000, scoped, tag = 'input window, operand 2']
    #allocation12 [shape = 'u8[16384]{0}', space=vmem, size = 0x4000, scoped, tag = 'input window, operand 3, single buffered']
    #allocation13 [shape = 's32[1]{0}', space=sflag, size = 0x4, scoped, tag = 'scoped memory for tpu_custom_call.1']
    #allocation14 [shape = 'u8[16384]{0}', space=vmem, size = 0x4000, scoped, tag = 'input window, operand 4, single buffered']
    #allocation15 [shape = 'u8[16384]{0}', space=vmem, size = 0x4000, scoped, tag = 'input window, operand 5, single buffered']
    #allocation16 [shape = 's32[1]{0}', space=sflag, size = 0x4, scoped, tag = 'scoped memory for tpu_custom_call.1']
    #allocation17 [shape = 'u8[16384]{0}', space=vmem, size = 0x4000, scoped, tag = 'input window, operand 6, single buffered']
    #allocation18 [shape = 'u8[8192]{0}', space=vmem, size = 0x2000, scoped, tag = 'output window, operand 0']
    %12 = vsyncpa [#allocation7], 0
    %s13 = scalar_lea.sflag [#allocation7], 1
    %14 = vsyncpa %s13, 0
    %15 = vsyncpa [#allocation10], 0
    %s16 = scalar_lea.sflag [#allocation10], 1
    %17 = vsyncpa %s16, 0
    %18 = vsyncpa [#allocation13], 0
    %19 = vsyncpa [#allocation16], 0
    %20 = vsyncpa [#allocation8], 0
    %s21 = scalar_lea.sflag [#allocation8], 1
    %22 = vsyncpa %s21, 0
    loop: start=0, step=1, limit=4
    $region2: #{tpu_custom_call.1} parent=1 // loop_pre_header
      _
    $region3: #{tpu_custom_call.1} parent=1 // loop_header
      %s24 = sphi 0, %s28
      %p25 = scmp.ge.s32.totalorder %s24, 4
      %s31 = sphi 0, %s43
      %s32 = sphi 0, %s39
      %s33 = sphi 0, %s31
      %s34 = sphi 0, %s32
      %s35 = sphi 0, %s33
      %s36 = sphi 0, %s34
      %s46 = sphi 0, %s48
      %s49 = sphi 0, %s46
      %s50 = sphi 0, %s49
      %s66 = sphi 0, %s50
      %s74 = sphi 0, %s76
      %s77 = sphi 0, %s74
      %s78 = sphi 0, %s77
      %s94 = sphi 0, %s78
      %s102 = sphi 0, %s104
      %s105 = sphi 0, %s102
      %s106 = sphi 0, %s105
      %s122 = sphi 0, %s106
      %s126 = sphi 0, %s126
      %s128 = sphi 0, %s126
      %s129 = sphi 0, %s128
      %s143 = sphi 0, %s129
      %s147 = sphi 0, %s147
      %s149 = sphi 0, %s147
      %s150 = sphi 0, %s149
      %s164 = sphi 0, %s150
      %s168 = sphi 0, %s168
      %s170 = sphi 0, %s168
      %s171 = sphi 0, %s170
      %s185 = sphi 0, %s171
      %s189 = sphi 0, %s189
      %s191 = sphi 0, %s189
      %s192 = sphi 0, %s191
      %s206 = sphi 0, %s192
      %s212 = sphi 0, %s214
      %s215 = sphi 0, %s212
      %s216 = sphi 0, %s215
      %s232 = sphi 0, %s216
    $region4: #{tpu_custom_call.1} parent=1 // loop_header_branch
      %27 = sbr.rel (%p25) target = $region8
    $region5: #{tpu_custom_call.1} parent=1 // loop_body
      %s29 = ssub.s32 %s24, 1
      %s30 = ssub.s32 %s24, 2
      %s37 = sadd.s32 1, %s32
      %p38 = scmp.ge.s32.totalorder %s37, 1
      %s39 = scalar_select %p38, 0, %s37
      %s40 = sadd.s32 1, %s31
      %s41 = scalar_select %p38, %s40, %s31
      %p42 = scmp.ge.s32.totalorder %s41, 2
      %s43 = scalar_select %p42, 0, %s41
      %s44 = ssub.s32 %s31, %s43
      %p45 = scmp.eq.s32.totalorder %s44, 0
      %s47 = sadd.s32 %s46, 1
      %s48 = scalar_select %p45, %s46, %s47
      %p51 = pneg %p45
      %p52 = scmp.eq.s32.totalorder %s24, 1
      %p53 = por %p51, %p52
      %p54 = scmp.ne.s32.totalorder %s46, %s49
      %p55 = scmp.eq.s32.totalorder %s24, 0
      %p56 = por %p54, %p55
      %p57 = scmp.ne.s32.totalorder %s46, %s49
      %p58 = scmp.eq.s32.totalorder %s29, 1
      %p59 = por %p57, %p58
      %p60 = scmp.ne.s32.totalorder %s49, %s50
      %p61 = scmp.eq.s32.totalorder %s29, 0
      %p62 = por %p60, %p61
      %p63 = scmp.ne.s32.totalorder %s49, %s50
      %p64 = scmp.eq.s32.totalorder %s30, 1
      %p65 = por %p63, %p64
      %p67 = scmp.ne.s32.totalorder %s50, %s66
      %p68 = scmp.eq.s32.totalorder %s30, 0
      %p69 = por %p67, %p68
      %s70 = ssub.s32 %s31, %s43
      %s71 = ssub.s32 %s32, %s39
      %s72 = sor.u32 %s70, %s71
      %p73 = scmp.eq.s32.totalorder %s72, 0
      %s75 = sadd.s32 %s74, 1
      %s76 = scalar_select %p73, %s74, %s75
      %p79 = pneg %p73
      %p80 = scmp.eq.s32.totalorder %s24, 1
      %p81 = por %p79, %p80
      %p82 = scmp.ne.s32.totalorder %s74, %s77
      %p83 = scmp.eq.s32.totalorder %s24, 0
      %p84 = por %p82, %p83
      %p85 = scmp.ne.s32.totalorder %s74, %s77
      %p86 = scmp.eq.s32.totalorder %s29, 1
      %p87 = por %p85, %p86
      %p88 = scmp.ne.s32.totalorder %s77, %s78
      %p89 = scmp.eq.s32.totalorder %s29, 0
      %p90 = por %p88, %p89
      %p91 = scmp.ne.s32.totalorder %s77, %s78
      %p92 = scmp.eq.s32.totalorder %s30, 1
      %p93 = por %p91, %p92
      %p95 = scmp.ne.s32.totalorder %s78, %s94
      %p96 = scmp.eq.s32.totalorder %s30, 0
      %p97 = por %p95, %p96
      %s98 = ssub.s32 %s31, %s43
      %s99 = ssub.s32 %s32, %s39
      %s100 = sor.u32 %s98, %s99
      %p101 = scmp.eq.s32.totalorder %s100, 0
      %s103 = sadd.s32 %s102, 1
      %s104 = scalar_select %p101, %s102, %s103
      %p107 = pneg %p101
      %p108 = scmp.eq.s32.totalorder %s24, 1
      %p109 = por %p107, %p108
      %p110 = scmp.ne.s32.totalorder %s102, %s105
      %p111 = scmp.eq.s32.totalorder %s24, 0
      %p112 = por %p110, %p111
      %p113 = scmp.ne.s32.totalorder %s102, %s105
      %p114 = scmp.eq.s32.totalorder %s29, 1
      %p115 = por %p113, %p114
      %p116 = scmp.ne.s32.totalorder %s105, %s106
      %p117 = scmp.eq.s32.totalorder %s29, 0
      %p118 = por %p116, %p117
      %p119 = scmp.ne.s32.totalorder %s105, %s106
      %p120 = scmp.eq.s32.totalorder %s30, 1
      %p121 = por %p119, %p120
      %p123 = scmp.ne.s32.totalorder %s106, %s122
      %p124 = scmp.eq.s32.totalorder %s30, 0
      %p125 = por %p123, %p124
      %s127 = sadd.s32 %s126, 1
      %p130 = scmp.eq.s32.totalorder %s24, 1
      %p131 = scmp.ne.s32.totalorder %s126, %s128
      %p132 = scmp.eq.s32.totalorder %s24, 0
      %p133 = por %p131, %p132
      %p134 = scmp.ne.s32.totalorder %s126, %s128
      %p135 = scmp.eq.s32.totalorder %s29, 1
      %p136 = por %p134, %p135
      %p137 = scmp.ne.s32.totalorder %s128, %s129
      %p138 = scmp.eq.s32.totalorder %s29, 0
      %p139 = por %p137, %p138
      %p140 = scmp.ne.s32.totalorder %s128, %s129
      %p141 = scmp.eq.s32.totalorder %s30, 1
      %p142 = por %p140, %p141
      %p144 = scmp.ne.s32.totalorder %s129, %s143
      %p145 = scmp.eq.s32.totalorder %s30, 0
      %p146 = por %p144, %p145
      %s148 = sadd.s32 %s147, 1
      %p151 = scmp.eq.s32.totalorder %s24, 1
      %p152 = scmp.ne.s32.totalorder %s147, %s149
      %p153 = scmp.eq.s32.totalorder %s24, 0
      %p154 = por %p152, %p153
      %p155 = scmp.ne.s32.totalorder %s147, %s149
      %p156 = scmp.eq.s32.totalorder %s29, 1
      %p157 = por %p155, %p156
      %p158 = scmp.ne.s32.totalorder %s149, %s150
      %p159 = scmp.eq.s32.totalorder %s29, 0
      %p160 = por %p158, %p159
      %p161 = scmp.ne.s32.totalorder %s149, %s150
      %p162 = scmp.eq.s32.totalorder %s30, 1
      %p163 = por %p161, %p162
      %p165 = scmp.ne.s32.totalorder %s150, %s164
      %p166 = scmp.eq.s32.totalorder %s30, 0
      %p167 = por %p165, %p166
      %s169 = sadd.s32 %s168, 1
      %p172 = scmp.eq.s32.totalorder %s24, 1
      %p173 = scmp.ne.s32.totalorder %s168, %s170
      %p174 = scmp.eq.s32.totalorder %s24, 0
      %p175 = por %p173, %p174
      %p176 = scmp.ne.s32.totalorder %s168, %s170
      %p177 = scmp.eq.s32.totalorder %s29, 1
      %p178 = por %p176, %p177
      %p179 = scmp.ne.s32.totalorder %s170, %s171
      %p180 = scmp.eq.s32.totalorder %s29, 0
      %p181 = por %p179, %p180
      %p182 = scmp.ne.s32.totalorder %s170, %s171
      %p183 = scmp.eq.s32.totalorder %s30, 1
      %p184 = por %p182, %p183
      %p186 = scmp.ne.s32.totalorder %s171, %s185
      %p187 = scmp.eq.s32.totalorder %s30, 0
      %p188 = por %p186, %p187
      %s190 = sadd.s32 %s189, 1
      %p193 = scmp.eq.s32.totalorder %s24, 1
      %p194 = scmp.ne.s32.totalorder %s189, %s191
      %p195 = scmp.eq.s32.totalorder %s24, 0
      %p196 = por %p194, %p195
      %p197 = scmp.ne.s32.totalorder %s189, %s191
      %p198 = scmp.eq.s32.totalorder %s29, 1
      %p199 = por %p197, %p198
      %p200 = scmp.ne.s32.totalorder %s191, %s192
      %p201 = scmp.eq.s32.totalorder %s29, 0
      %p202 = por %p200, %p201
      %p203 = scmp.ne.s32.totalorder %s191, %s192
      %p204 = scmp.eq.s32.totalorder %s30, 1
      %p205 = por %p203, %p204
      %p207 = scmp.ne.s32.totalorder %s192, %s206
      %p208 = scmp.eq.s32.totalorder %s30, 0
      %p209 = por %p207, %p208
      %s210 = ssub.s32 %s31, %s43
      %p211 = scmp.eq.s32.totalorder %s210, 0
      %s213 = sadd.s32 %s212, 1
      %s214 = scalar_select %p211, %s212, %s213
      %p217 = pneg %p211
      %p218 = scmp.eq.s32.totalorder %s24, 1
      %p219 = por %p217, %p218
      %p220 = scmp.ne.s32.totalorder %s212, %s215
      %p221 = scmp.eq.s32.totalorder %s24, 0
      %p222 = por %p220, %p221
      %p223 = scmp.ne.s32.totalorder %s212, %s215
      %p224 = scmp.eq.s32.totalorder %s29, 1
      %p225 = por %p223, %p224
      %p226 = scmp.ne.s32.totalorder %s215, %s216
      %p227 = scmp.eq.s32.totalorder %s29, 0
      %p228 = por %p226, %p227
      %p229 = scmp.ne.s32.totalorder %s215, %s216
      %p230 = scmp.eq.s32.totalorder %s30, 1
      %p231 = por %p229, %p230
      %p233 = scmp.ne.s32.totalorder %s216, %s232
      %p234 = scmp.eq.s32.totalorder %s30, 0
      %p235 = por %p233, %p234
      %p236 = scmp.le.s32.totalorder 1, %s24
      %p237 = scmp.lt.s32.totalorder %s24, 3
      %p238 = pnand %p236, %p237
      %p239 = pneg %p238
      // Predicated region
      $region9: #{tpu_custom_call.1} parent=5 // pred_check
        _
      $region10: #{tpu_custom_call.1} parent=5 // pred_check_branch
        %241 = sbr.rel (%p238) target = $region12
      $region11: #{tpu_custom_call.1} parent=5 // pred_region
        %s242 = ssub.s32 %s24, 1
        // Predicated region
        $region13: #{tpu_custom_call.1} parent=11 // pred_check
          %p243 = pneg %p139
        $region14: #{tpu_custom_call.1} parent=11 // pred_check_branch
          %245 = sbr.rel (%p243) target = $region16
        $region15: #{tpu_custom_call.1} parent=11 // pred_region
          %s247 = ssub.s32 512, 512
          %248 = vsyncadd [#allocation13], %s247
          %s249 = sshll.u32 [#allocation12], 4
          %s250 = int_to_ptr.vmem [resolvable:$true] %s249
          %255 = dma.hbm_to_vmem [thread:$0]  %s3, 512, %s250, [#allocation13], 128, 128, 8
        $region16: #{tpu_custom_call.1} parent=11 // pred_fallthru
          _
        // Predicated region
        $region17: #{tpu_custom_call.1} parent=11 // pred_check
          %p256 = pneg %p160
        $region18: #{tpu_custom_call.1} parent=11 // pred_check_branch
          %258 = sbr.rel (%p256) target = $region20
        $region19: #{tpu_custom_call.1} parent=11 // pred_region
          %s260 = ssub.s32 512, 512
          %261 = vsyncadd [#allocation13], %s260
          %s262 = sshll.u32 [#allocation14], 4
          %s263 = int_to_ptr.vmem [resolvable:$true] %s262
          %268 = dma.hbm_to_vmem [thread:$0]  %s4, 512, %s263, [#allocation13], 128, 128, 8
        $region20: #{tpu_custom_call.1} parent=11 // pred_fallthru
          _
        // Predicated region
        $region21: #{tpu_custom_call.1} parent=11 // pred_check
          %p269 = pneg %p181
        $region22: #{tpu_custom_call.1} parent=11 // pred_check_branch
          %271 = sbr.rel (%p269) target = $region24
        $region23: #{tpu_custom_call.1} parent=11 // pred_region
          %s273 = ssub.s32 512, 512
          %274 = vsyncadd [#allocation16], %s273
          %s275 = sshll.u32 [#allocation15], 4
          %s276 = int_to_ptr.vmem [resolvable:$true] %s275
          %281 = dma.hbm_to_vmem [thread:$0]  %s5, 512, %s276, [#allocation16], 128, 128, 8
        $region24: #{tpu_custom_call.1} parent=11 // pred_fallthru
          _
        // Predicated region
        $region25: #{tpu_custom_call.1} parent=11 // pred_check
          %p282 = pneg %p202
        $region26: #{tpu_custom_call.1} parent=11 // pred_check_branch
          %284 = sbr.rel (%p282) target = $region28
        $region27: #{tpu_custom_call.1} parent=11 // pred_region
          %s286 = ssub.s32 512, 512
          %287 = vsyncadd [#allocation16], %s286
          %s288 = sshll.u32 [#allocation17], 4
          %s289 = int_to_ptr.vmem [resolvable:$true] %s288
          %294 = dma.hbm_to_vmem [thread:$0]  %s6, 512, %s289, [#allocation16], 128, 128, 8
        $region28: #{tpu_custom_call.1} parent=11 // pred_fallthru
          _
      $region12: #{tpu_custom_call.1} parent=5 // pred_fallthru
        _
      %p295 = scmp.lt.s32.totalorder %s24, 2
      // Predicated region
      $region29: #{tpu_custom_call.1} parent=5 // pred_check
        %p296 = pneg %p295
      $region30: #{tpu_custom_call.1} parent=5 // pred_check_branch
        %298 = sbr.rel (%p296) target = $region32
      $region31: #{tpu_custom_call.1} parent=5 // pred_region
        // Predicated region
        $region33: #{tpu_custom_call.1} parent=31 // pred_check
          %p299 = pneg %p56
        $region34: #{tpu_custom_call.1} parent=31 // pred_check_branch
          %301 = sbr.rel (%p299) target = $region36
        $region35: #{tpu_custom_call.1} parent=31 // pred_region
          %s302 = sand.u32 %s46, 1
          %s303 = scalar_lea.sflag [#allocation7], %s302
          %s304 = sand.u32 %s46, 1
          %s305 = smul.addr %s304, 8
          %s306 = scalar_lea.vmem [#allocation6], %s305
          %s308 = ssub.s32 128, 128
          %309 = vsyncadd %s303, %s308
          %s310 = smul.addr %s31, 128
          %s311 = scalar_lea.hbm %s0, %s310
          %s313 = sshll.u32 %s306, 4
          %s314 = int_to_ptr.vmem [resolvable:$true] %s313
          %316 = dma.hbm_to_vmem [thread:$0]  %s311, 128, %s314, %s303
        $region36: #{tpu_custom_call.1} parent=31 // pred_fallthru
          _
        // Predicated region
        $region37: #{tpu_custom_call.1} parent=31 // pred_check
          %p317 = pneg %p84
        $region38: #{tpu_custom_call.1} parent=31 // pred_check_branch
          %319 = sbr.rel (%p317) target = $region40
        $region39: #{tpu_custom_call.1} parent=31 // pred_region
          %s320 = sand.u32 %s24, 1
          %s321 = scalar_lea.sflag [#allocation10], %s320
          %s322 = sand.u32 %s74, 1
          %s323 = smul.addr %s322, 8
          %s324 = scalar_lea.vmem [#allocation9], %s323
          %s326 = ssub.s32 128, 128
          %327 = vsyncadd %s321, %s326
          %s328 = sadd.s32 %s32, %s31
          %s329 = smul.addr %s328, 128
          %s330 = scalar_lea.hbm %s1, %s329
          %s332 = sshll.u32 %s324, 4
          %s333 = int_to_ptr.vmem [resolvable:$true] %s332
          %335 = dma.hbm_to_vmem [thread:$0]  %s330, 128, %s333, %s321
        $region40: #{tpu_custom_call.1} parent=31 // pred_fallthru
          _
        // Predicated region
        $region41: #{tpu_custom_call.1} parent=31 // pred_check
          %p336 = pneg %p112
        $region42: #{tpu_custom_call.1} parent=31 // pred_check_branch
          %338 = sbr.rel (%p336) target = $region44
        $region43: #{tpu_custom_call.1} parent=31 // pred_region
          %s339 = sand.u32 %s24, 1
          %s340 = scalar_lea.sflag [#allocation10], %s339
          %s341 = sand.u32 %s102, 1
          %s342 = smul.addr %s341, 8
          %s343 = scalar_lea.vmem [#allocation11], %s342
          %s345 = ssub.s32 128, 128
          %346 = vsyncadd %s340, %s345
          %s347 = sadd.s32 %s32, %s31
          %s348 = smul.addr %s347, 128
          %s349 = scalar_lea.hbm %s2, %s348
          %s351 = sshll.u32 %s343, 4
          %s352 = int_to_ptr.vmem [resolvable:$true] %s351
          %354 = dma.hbm_to_vmem [thread:$0]  %s349, 128, %s352, %s340
        $region44: #{tpu_custom_call.1} parent=31 // pred_fallthru
          _
      $region32: #{tpu_custom_call.1} parent=5 // pred_fallthru
        _
      %p355 = scmp.le.s32.totalorder 1, %s24
      %p356 = scmp.lt.s32.totalorder %s24, 3
      %p357 = pnand %p355, %p356
      %p358 = pneg %p357
      // Predicated region
      $region45: #{tpu_custom_call.1} parent=5 // pred_check
        _
      $region46: #{tpu_custom_call.1} parent=5 // pred_check_branch
        %360 = sbr.rel (%p357) target = $region48
      $region47: #{tpu_custom_call.1} parent=5 // pred_region
        %s361 = ssub.s32 %s24, 1
        %s362 = sand.u32 %s49, 1
        %s363 = scalar_lea.sflag [#allocation7], %s362
        %s364 = sand.u32 %s49, 1
        %s365 = smul.addr %s364, 8
        %s366 = scalar_lea.vmem [#allocation6], %s365
        // Predicated region
        $region49: #{tpu_custom_call.1} parent=47 // pred_check
          %p367 = pneg %p62
        $region50: #{tpu_custom_call.1} parent=47 // pred_check_branch
          %369 = sbr.rel (%p367) target = $region52
        $region51: #{tpu_custom_call.1} parent=47 // pred_region
          %370 = dma.done %s363, 128
        $region52: #{tpu_custom_call.1} parent=47 // pred_fallthru
          _
        %s371 = sand.u32 %s29, 1
        %s372 = scalar_lea.sflag [#allocation10], %s371
        %s373 = sand.u32 %s77, 1
        %s374 = smul.addr %s373, 8
        %s375 = scalar_lea.vmem [#allocation9], %s374
        // Predicated region
        $region53: #{tpu_custom_call.1} parent=47 // pred_check
          %p376 = pneg %p90
        $region54: #{tpu_custom_call.1} parent=47 // pred_check_branch
          %378 = sbr.rel (%p376) target = $region56
        $region55: #{tpu_custom_call.1} parent=47 // pred_region
          %379 = dma.done %s372, 128
        $region56: #{tpu_custom_call.1} parent=47 // pred_fallthru
          _
        %s380 = sand.u32 %s29, 1
        %s381 = scalar_lea.sflag [#allocation10], %s380
        %s382 = sand.u32 %s105, 1
        %s383 = smul.addr %s382, 8
        %s384 = scalar_lea.vmem [#allocation11], %s383
        // Predicated region
        $region57: #{tpu_custom_call.1} parent=47 // pred_check
          %p385 = pneg %p118
        $region58: #{tpu_custom_call.1} parent=47 // pred_check_branch
          %387 = sbr.rel (%p385) target = $region60
        $region59: #{tpu_custom_call.1} parent=47 // pred_region
          %388 = dma.done %s381, 128
        $region60: #{tpu_custom_call.1} parent=47 // pred_fallthru
          _
        // Predicated region
        $region61: #{tpu_custom_call.1} parent=47 // pred_check
          %p389 = pneg %p139
        $region62: #{tpu_custom_call.1} parent=47 // pred_check_branch
          %391 = sbr.rel (%p389) target = $region64
        $region63: #{tpu_custom_call.1} parent=47 // pred_region
          %392 = dma.done [#allocation13], 512
        $region64: #{tpu_custom_call.1} parent=47 // pred_fallthru
          _
        // Predicated region
        $region65: #{tpu_custom_call.1} parent=47 // pred_check
          %p393 = pneg %p160
        $region66: #{tpu_custom_call.1} parent=47 // pred_check_branch
          %395 = sbr.rel (%p393) target = $region68
        $region67: #{tpu_custom_call.1} parent=47 // pred_region
          %396 = dma.done [#allocation13], 512
        $region68: #{tpu_custom_call.1} parent=47 // pred_fallthru
          _
        // Predicated region
        $region69: #{tpu_custom_call.1} parent=47 // pred_check
          %p397 = pneg %p181
        $region70: #{tpu_custom_call.1} parent=47 // pred_check_branch
          %399 = sbr.rel (%p397) target = $region72
        $region71: #{tpu_custom_call.1} parent=47 // pred_region
          %400 = dma.done [#allocation16], 512
        $region72: #{tpu_custom_call.1} parent=47 // pred_fallthru
          _
        // Predicated region
        $region73: #{tpu_custom_call.1} parent=47 // pred_check
          %p401 = pneg %p202
        $region74: #{tpu_custom_call.1} parent=47 // pred_check_branch
          %403 = sbr.rel (%p401) target = $region76
        $region75: #{tpu_custom_call.1} parent=47 // pred_region
          %404 = dma.done [#allocation16], 512
        $region76: #{tpu_custom_call.1} parent=47 // pred_fallthru
          _
        %s405 = sand.u32 %s49, 1
        %s406 = scalar_lea.sflag [#allocation7], %s405
        %s407 = sand.u32 %s49, 1
        %s408 = smul.addr %s407, 8
        %s409 = scalar_lea.vmem [#allocation6], %s408
        %p410 = pneg %p62
        %p411 = pneg %p59
        %s412 = sand.u32 %s29, 1
        %s413 = scalar_lea.sflag [#allocation10], %s412
        %s414 = sand.u32 %s77, 1
        %s415 = smul.addr %s414, 8
        %s416 = scalar_lea.vmem [#allocation9], %s415
        %p417 = pneg %p90
        %p418 = pneg %p87
        %s419 = sand.u32 %s29, 1
        %s420 = scalar_lea.sflag [#allocation10], %s419
        %s421 = sand.u32 %s105, 1
        %s422 = smul.addr %s421, 8
        %s423 = scalar_lea.vmem [#allocation11], %s422
        %p424 = pneg %p118
        %p425 = pneg %p115
        %p426 = pneg %p139
        %p427 = pneg %p136
        %p428 = pneg %p160
        %p429 = pneg %p157
        %p430 = pneg %p181
        %p431 = pneg %p178
        %p432 = pneg %p202
        %p433 = pneg %p199
        %p434 = pneg %p228
        %p435 = pneg %p225
        %s436 = sand.u32 %s215, 1
        %s437 = scalar_lea.sflag [#allocation8], %s436
        %s438 = sand.u32 %s215, 1
        %s439 = smul.addr %s438, 8
        %s440 = scalar_lea.vmem [#allocation18], %s439
        %p441 = scmp.eq.s32.totalorder %s34, 0
        // Predicated region
        $region77: #{tpu_custom_call.1} parent=47 // pred_check
          %p442 = pneg %p441
        $region78: #{tpu_custom_call.1} parent=47 // pred_check_branch
          %444 = sbr.rel (%p442) target = $region80
        $region79: #{tpu_custom_call.1} parent=47 // pred_region
          %v445 = vld [vmem:[%s366] sm:$0xff]
          %v446 = vld [vmem:[#allocation12] sm:$0xff]
          %v447 = vld [vmem:[#allocation12 + $0x8] sm:$0xff]
          %v448 = vld [vmem:[#allocation12 + $0x10] sm:$0xff]
          %v449 = vld [vmem:[#allocation12 + $0x18] sm:$0xff]
          %vm450 = vcmask 261120
          %v452 = vsel %vm450, %v445, 0
          %454 = vmatprep.subr.mxu0 0.0
          %455 = vmatpush1.msra.mxu0 %v446
          %456 = vmatprep.subr.mxu0 0.0
          %457 = vmatpush1.msra.mxu0 %v447
          %458 = vmatprep.subr.mxu0 0.0
          %459 = vmatpush1.msra.mxu0 %v448
          %460 = vmatprep.subr.mxu0 0.0
          %461 = vmatpush1.msra.mxu0 %v449
          %462 = vmatprep.subr.mxu0 0.0
          %463 = vmatpush1.msra.mxu0 0.0
          %464 = vmatprep.subr.mxu0 0.0
          %465 = vmatpush1.msra.mxu0 0.0
          %466 = vmatprep.subr.mxu0 0.0
          %467 = vmatpush1.msra.mxu0 0.0
          %468 = vmatprep.subr.mxu0 0.0
          %469 = vmatpush1.msra.mxu0 0.0
          %470 = vmatprep.subr.mxu0 0.0
          %471 = vmatpush1.msra.mxu0 0.0
          %472 = vmatprep.subr.mxu0 0.0
          %473 = vmatpush1.msra.mxu0 0.0
          %474 = vmatprep.subr.mxu0 0.0
          %475 = vmatpush1.msra.mxu0 0.0
          %476 = vmatprep.subr.mxu0 0.0
          %477 = vmatpush1.msra.mxu0 0.0
          %478 = vmatprep.subr.mxu0 0.0
          %479 = vmatpush1.msra.mxu0 0.0
          %480 = vmatprep.subr.mxu0 0.0
          %481 = vmatpush1.msra.mxu0 0.0
          %482 = vmatprep.subr.mxu0 0.0
          %483 = vmatpush1.msra.mxu0 0.0
          %484 = vmatprep.subr.mxu0 0.0
          %485 = vmatpush1.msra.mxu0 0.0
          %486 = vmatprep.subr.mxu0 0.0
          %487 = vmatpush1.msra.mxu0 0.0
          %488 = vmatprep.subr.mxu0 0.0
          %489 = vmatpush1.msra.mxu0 0.0
          %490 = vmatprep.subr.mxu0 0.0
          %491 = vmatpush1.msra.mxu0 0.0
          %492 = vmatprep.subr.mxu0 0.0
          %493 = vmatpush1.msra.mxu0 0.0
          %494 = vmatprep.subr.mxu0 0.0
          %495 = vmatpush1.msra.mxu0 0.0
          %496 = vmatprep.subr.mxu0 0.0
          %497 = vmatpush1.msra.mxu0 0.0
          %498 = vmatprep.subr.mxu0 0.0
          %499 = vmatpush1.msra.mxu0 0.0
          %500 = vmatprep.subr.mxu0 0.0
          %501 = vmatpush1.msra.mxu0 0.0
          %502 = vmatprep.subr.mxu0 0.0
          %503 = vmatpush1.msra.mxu0 0.0
          %504 = vmatprep.subr.mxu0 0.0
          %505 = vmatpush1.msra.mxu0 0.0
          %506 = vmatprep.subr.mxu0 0.0
          %507 = vmatpush1.msra.mxu0 0.0
          %508 = vmatprep.subr.mxu0 0.0
          %509 = vmatpush1.msra.mxu0 0.0
          %510 = vmatprep.subr.mxu0 0.0
          %511 = vmatpush1.msra.mxu0 0.0
          %512 = vmatprep.subr.mxu0 0.0
          %513 = vmatpush1.msra.mxu0 0.0
          %514 = vmatprep.subr.mxu0 0.0
          %515 = vmatpush1.msra.mxu0 0.0
          %516 = vmatprep.subr.mxu0 0.0
          %517 = vmatpush1.msra.mxu0 0.0
          %518 = vmatprep.mubr.f32.mxu0 0.0
          %519 = vmatmul.mubr.f32.gmra.mrb[0].mxu0 %v452
          %v520 = vpop.f32.mrb[0].mxu0
          %v521 = vadd.f32 0.0, %v520
          %v522 = vpop.f32.mrb[0].mxu0
          %523 = vdwg.mxu0
          %524 = vst.msk [vmem:[#allocation2] sm:$0xff] %vm450, %v521
          %vm525 = vcmask 64512
          %526 = vst.msk [vmem:[#allocation3] sm:$0xff] %vm525, 0.0
          %527 = vst.msk [vmem:[#allocation3 + $0x8] sm:$0xff] %vm525, 0.0
          %528 = vst.msk [vmem:[#allocation3 + $0x10] sm:$0xff] %vm525, 0.0
          %529 = vst.msk [vmem:[#allocation3 + $0x18] sm:$0xff] %vm525, 0.0
          %vm530 = vcmask 7168
          %531 = vst.msk [vmem:[#allocation4] sm:$0xff] %vm530, -inf
          %532 = vst.msk [vmem:[#allocation4 + $0x8] sm:$0xff] %vm530, -inf
          %533 = vst.msk [vmem:[#allocation4 + $0x10] sm:$0xff] %vm530, -inf
          %534 = vst.msk [vmem:[#allocation4 + $0x18] sm:$0xff] %vm530, -inf
          %535 = vst.msk [vmem:[#allocation5] sm:$0xff] %vm530, 0.0
          %536 = vst.msk [vmem:[#allocation5 + $0x8] sm:$0xff] %vm530, 0.0
          %537 = vst.msk [vmem:[#allocation5 + $0x10] sm:$0xff] %vm530, 0.0
          %538 = vst.msk [vmem:[#allocation5 + $0x18] sm:$0xff] %vm530, 0.0
        $region80: #{tpu_custom_call.1} parent=47 // pred_fallthru
          _
        %v539 = vld [vmem:[%s375] sm:$0xff]
        %v540 = vld [vmem:[%s384] sm:$0xff]
        %v541 = vld [vmem:[#allocation14] sm:$0xff]
        %v542 = vld [vmem:[#allocation14 + $0x8] sm:$0xff]
        %v543 = vld [vmem:[#allocation14 + $0x10] sm:$0xff]
        %v544 = vld [vmem:[#allocation14 + $0x18] sm:$0xff]
        %vm545 = vcmask 261120
        %v547 = vsel %vm545, %v539, 0
        %549 = vmatprep.subr.mxu0 0.0
        %550 = vmatpush1.msra.mxu0 %v541
        %551 = vmatprep.subr.mxu0 0.0
        %552 = vmatpush1.msra.mxu0 %v542
        %553 = vmatprep.subr.mxu0 0.0
        %554 = vmatpush1.msra.mxu0 %v543
        %555 = vmatprep.subr.mxu0 0.0
        %556 = vmatpush1.msra.mxu0 %v544
        %557 = vmatprep.subr.mxu0 0.0
        %558 = vmatpush1.msra.mxu0 0.0
        %559 = vmatprep.subr.mxu0 0.0
        %560 = vmatpush1.msra.mxu0 0.0
        %561 = vmatprep.subr.mxu0 0.0
        %562 = vmatpush1.msra.mxu0 0.0
        %563 = vmatprep.subr.mxu0 0.0
        %564 = vmatpush1.msra.mxu0 0.0
        %565 = vmatprep.subr.mxu0 0.0
        %566 = vmatpush1.msra.mxu0 0.0
        %567 = vmatprep.subr.mxu0 0.0
        %568 = vmatpush1.msra.mxu0 0.0
        %569 = vmatprep.subr.mxu0 0.0
        %570 = vmatpush1.msra.mxu0 0.0
        %571 = vmatprep.subr.mxu0 0.0
        %572 = vmatpush1.msra.mxu0 0.0
        %573 = vmatprep.subr.mxu0 0.0
        %574 = vmatpush1.msra.mxu0 0.0
        %575 = vmatprep.subr.mxu0 0.0
        %576 = vmatpush1.msra.mxu0 0.0
        %577 = vmatprep.subr.mxu0 0.0
        %578 = vmatpush1.msra.mxu0 0.0
        %579 = vmatprep.subr.mxu0 0.0
        %580 = vmatpush1.msra.mxu0 0.0
        %581 = vmatprep.subr.mxu0 0.0
        %582 = vmatpush1.msra.mxu0 0.0
        %583 = vmatprep.subr.mxu0 0.0
        %584 = vmatpush1.msra.mxu0 0.0
        %585 = vmatprep.subr.mxu0 0.0
        %586 = vmatpush1.msra.mxu0 0.0
        %587 = vmatprep.subr.mxu0 0.0
        %588 = vmatpush1.msra.mxu0 0.0
        %589 = vmatprep.subr.mxu0 0.0
        %590 = vmatpush1.msra.mxu0 0.0
        %591 = vmatprep.subr.mxu0 0.0
        %592 = vmatpush1.msra.mxu0 0.0
        %593 = vmatprep.subr.mxu0 0.0
        %594 = vmatpush1.msra.mxu0 0.0
        %595 = vmatprep.subr.mxu0 0.0
        %596 = vmatpush1.msra.mxu0 0.0
        %597 = vmatprep.subr.mxu0 0.0
        %598 = vmatpush1.msra.mxu0 0.0
        %599 = vmatprep.subr.mxu0 0.0
        %600 = vmatpush1.msra.mxu0 0.0
        %601 = vmatprep.subr.mxu0 0.0
        %602 = vmatpush1.msra.mxu0 0.0
        %603 = vmatprep.subr.mxu0 0.0
        %604 = vmatpush1.msra.mxu0 0.0
        %605 = vmatprep.subr.mxu0 0.0
        %606 = vmatpush1.msra.mxu0 0.0
        %607 = vmatprep.subr.mxu0 0.0
        %608 = vmatpush1.msra.mxu0 0.0
        %609 = vmatprep.subr.mxu0 0.0
        %610 = vmatpush1.msra.mxu0 0.0
        %611 = vmatprep.subr.mxu0 0.0
        %612 = vmatpush1.msra.mxu0 0.0
        %613 = vmatprep.mubr.f32.mxu0 0.0
        %614 = vmatmul.mubr.f32.gmra.mrb[0].mxu0 %v547
        %v615 = vpop.f32.mrb[0].mxu0
        %v616 = vadd.f32 0.0, %v615
        %v617 = vpop.f32.mrb[0].mxu0
        %618 = vdwg.mxu0
        %v619 = vld [vmem:[#allocation15] sm:$0xff]
        %v620 = vld [vmem:[#allocation15 + $0x8] sm:$0xff]
        %v621 = vld [vmem:[#allocation15 + $0x10] sm:$0xff]
        %v622 = vld [vmem:[#allocation15 + $0x18] sm:$0xff]
        %v624 = vsel %vm545, %v540, 0
        %626 = vmatprep.subr.mxu0 0.0
        %627 = vmatpush1.msra.mxu0 %v619
        %628 = vmatprep.subr.mxu0 0.0
        %629 = vmatpush1.msra.mxu0 %v620
        %630 = vmatprep.subr.mxu0 0.0
        %631 = vmatpush1.msra.mxu0 %v621
        %632 = vmatprep.subr.mxu0 0.0
        %633 = vmatpush1.msra.mxu0 %v622
        %634 = vmatprep.subr.mxu0 0.0
        %635 = vmatpush1.msra.mxu0 0.0
        %636 = vmatprep.subr.mxu0 0.0
        %637 = vmatpush1.msra.mxu0 0.0
        %638 = vmatprep.subr.mxu0 0.0
        %639 = vmatpush1.msra.mxu0 0.0
        %640 = vmatprep.subr.mxu0 0.0
        %641 = vmatpush1.msra.mxu0 0.0
        %642 = vmatprep.subr.mxu0 0.0
        %643 = vmatpush1.msra.mxu0 0.0
        %644 = vmatprep.subr.mxu0 0.0
        %645 = vmatpush1.msra.mxu0 0.0
        %646 = vmatprep.subr.mxu0 0.0
        %647 = vmatpush1.msra.mxu0 0.0
        %648 = vmatprep.subr.mxu0 0.0
        %649 = vmatpush1.msra.mxu0 0.0
        %650 = vmatprep.subr.mxu0 0.0
        %651 = vmatpush1.msra.mxu0 0.0
        %652 = vmatprep.subr.mxu0 0.0
        %653 = vmatpush1.msra.mxu0 0.0
        %654 = vmatprep.subr.mxu0 0.0
        %655 = vmatpush1.msra.mxu0 0.0
        %656 = vmatprep.subr.mxu0 0.0
        %657 = vmatpush1.msra.mxu0 0.0
        %658 = vmatprep.subr.mxu0 0.0
        %659 = vmatpush1.msra.mxu0 0.0
        %660 = vmatprep.subr.mxu0 0.0
        %661 = vmatpush1.msra.mxu0 0.0
        %662 = vmatprep.subr.mxu0 0.0
        %663 = vmatpush1.msra.mxu0 0.0
        %664 = vmatprep.subr.mxu0 0.0
        %665 = vmatpush1.msra.mxu0 0.0
        %666 = vmatprep.subr.mxu0 0.0
        %667 = vmatpush1.msra.mxu0 0.0
        %668 = vmatprep.subr.mxu0 0.0
        %669 = vmatpush1.msra.mxu0 0.0
        %670 = vmatprep.subr.mxu0 0.0
        %671 = vmatpush1.msra.mxu0 0.0
        %672 = vmatprep.subr.mxu0 0.0
        %673 = vmatpush1.msra.mxu0 0.0
        %674 = vmatprep.subr.mxu0 0.0
        %675 = vmatpush1.msra.mxu0 0.0
        %676 = vmatprep.subr.mxu0 0.0
        %677 = vmatpush1.msra.mxu0 0.0
        %678 = vmatprep.subr.mxu0 0.0
        %679 = vmatpush1.msra.mxu0 0.0
        %680 = vmatprep.subr.mxu0 0.0
        %681 = vmatpush1.msra.mxu0 0.0
        %682 = vmatprep.subr.mxu0 0.0
        %683 = vmatpush1.msra.mxu0 0.0
        %684 = vmatprep.subr.mxu0 0.0
        %685 = vmatpush1.msra.mxu0 0.0
        %686 = vmatprep.subr.mxu0 0.0
        %687 = vmatpush1.msra.mxu0 0.0
        %688 = vmatprep.subr.mxu0 0.0
        %689 = vmatpush1.msra.mxu0 0.0
        %690 = vmatprep.mubr.f32.mxu0 0.0
        %691 = vmatmul.mubr.f32.gmra.mrb[0].mxu0 %v624
        %v692 = vpop.f32.mrb[0].mxu0
        %v693 = vadd.f32 0.0, %v692
        %v694 = vpop.f32.mrb[0].mxu0
        %695 = vdwg.mxu0
        %v696 = vld [vmem:[#allocation2] sm:$0xff]
        %vm697 = vcmask 64512
        %v699 = vsel %vm697, %v696, 0
        %v702 = vsel %vm697, %v616, 0
        %704 = vmatprep.subr.mxu0 0.0
        %705 = vmatpush1.xpose.msra.mxu0 %v702
        %706 = vmatprep.subr.mxu0 0.0
        %707 = vmatpush1.xpose.msra.mxu0 0.0
        %708 = vmatprep.subr.mxu0 0.0
        %709 = vmatpush1.xpose.msra.mxu0 0.0
        %710 = vmatprep.subr.mxu0 0.0
        %711 = vmatpush1.xpose.msra.mxu0 0.0
        %712 = vmatprep.subr.mxu0 0.0
        %713 = vmatpush1.xpose.msra.mxu0 0.0
        %714 = vmatprep.subr.mxu0 0.0
        %715 = vmatpush1.xpose.msra.mxu0 0.0
        %716 = vmatprep.subr.mxu0 0.0
        %717 = vmatpush1.xpose.msra.mxu0 0.0
        %718 = vmatprep.subr.mxu0 0.0
        %719 = vmatpush1.xpose.msra.mxu0 0.0
        %720 = vmatprep.subr.mxu0 0.0
        %721 = vmatpush1.xpose.msra.mxu0 0.0
        %722 = vmatprep.subr.mxu0 0.0
        %723 = vmatpush1.xpose.msra.mxu0 0.0
        %724 = vmatprep.subr.mxu0 0.0
        %725 = vmatpush1.xpose.msra.mxu0 0.0
        %726 = vmatprep.subr.mxu0 0.0
        %727 = vmatpush1.xpose.msra.mxu0 0.0
        %728 = vmatprep.subr.mxu0 0.0
        %729 = vmatpush1.xpose.msra.mxu0 0.0
        %730 = vmatprep.subr.mxu0 0.0
        %731 = vmatpush1.xpose.msra.mxu0 0.0
        %732 = vmatprep.subr.mxu0 0.0
        %733 = vmatpush1.xpose.msra.mxu0 0.0
        %734 = vmatprep.subr.mxu0 0.0
        %735 = vmatpush1.xpose.msra.mxu0 0.0
        %736 = vmatprep.subr.mxu0 0.0
        %737 = vmatpush1.xpose.msra.mxu0 0.0
        %738 = vmatprep.subr.mxu0 0.0
        %739 = vmatpush1.xpose.msra.mxu0 0.0
        %740 = vmatprep.subr.mxu0 0.0
        %741 = vmatpush1.xpose.msra.mxu0 0.0
        %742 = vmatprep.subr.mxu0 0.0
        %743 = vmatpush1.xpose.msra.mxu0 0.0
        %744 = vmatprep.subr.mxu0 0.0
        %745 = vmatpush1.xpose.msra.mxu0 0.0
        %746 = vmatprep.subr.mxu0 0.0
        %747 = vmatpush1.xpose.msra.mxu0 0.0
        %748 = vmatprep.subr.mxu0 0.0
        %749 = vmatpush1.xpose.msra.mxu0 0.0
        %750 = vmatprep.subr.mxu0 0.0
        %751 = vmatpush1.xpose.msra.mxu0 0.0
        %752 = vmatprep.subr.mxu0 0.0
        %753 = vmatpush1.xpose.msra.mxu0 0.0
        %754 = vmatprep.subr.mxu0 0.0
        %755 = vmatpush1.xpose.msra.mxu0 0.0
        %756 = vmatprep.subr.mxu0 0.0
        %757 = vmatpush1.xpose.msra.mxu0 0.0
        %758 = vmatprep.subr.mxu0 0.0
        %759 = vmatpush1.xpose.msra.mxu0 0.0
        %760 = vmatprep.subr.mxu0 0.0
        %761 = vmatpush1.xpose.msra.mxu0 0.0
        %762 = vmatprep.subr.mxu0 0.0
        %763 = vmatpush1.xpose.msra.mxu0 0.0
        %764 = vmatprep.subr.mxu0 0.0
        %765 = vmatpush1.xpose.msra.mxu0 0.0
        %766 = vmatprep.subr.mxu0 0.0
        %767 = vmatpush1.xpose.msra.mxu0 0.0
        %768 = vmatprep.mubr.f32.mxu0 0.0
        %769 = vmatmul.mubr.f32.gmra.mrb[0].mxu0 %v699
        %v770 = vpop.f32.mrb[0].mxu0
        %v771 = vadd.f32 0.0, %v770
        %v772 = vpop.f32.mrb[0].mxu0
        %773 = vdwg.mxu0
        %v774 = vmul.f32 %v771, 0.35355338
        %v775 = vld [vmem:[#allocation4] sm:$0xff]
        %v776 = vld [vmem:[#allocation5] sm:$0xff]
        %v777 = vsel %vm697, %v774, -inf
        %778 = vmax.xlane.f32.xlu0 %v777
        %v779 = vpop.xlane.xlu0 %778
        %v780 = vmax.f32 %v775, %v779
        %v781 = vsub.f32 %v775, %v780
        %v782 = vmul.f32 %v781, 1.442695
        %v783 = vpow.pop %v782
        %785 = vset.pattern.permute.xlu0 0
        %786 = vperm.xlu0 %785, %v780
        %v787 = vpop.permute.xlu0 %786
        %v789 = vsub.f32 %v774, %v787
        %v790 = vmul.f32 %v789, 1.442695
        %v791 = vpow.pop %v790
        %v792 = vmul.f32 %v783, %v776
        %v793 = vsel %vm697, %v791, 0.0
        %794 = vadd.xlane.f32.xlu0 %v793
        %v795 = vpop.xlane.xlu0 %794
        %v796 = vadd.f32 %v792, %v795
        %vm797 = vcmask 7168
        %798 = vst.msk [vmem:[#allocation5] sm:$0xff] %vm797, %v796
        %799 = vst.msk [vmem:[#allocation4] sm:$0xff] %vm797, %v780
        %vm800 = vcmp.gt.f32.partialorder %v774, 0.0
        %v801 = vsel %vm800, %v791, 0.0
        %v803 = vsel %vm697, %v801, 0
        %805 = vmatprep.subr.mxu0 0.0
        %806 = vmatpush1.msra.mxu0 %v693
        %807 = vmatprep.subr.mxu0 0.0
        %808 = vmatpush1.msra.mxu0 0.0
        %809 = vmatprep.subr.mxu0 0.0
        %810 = vmatpush1.msra.mxu0 0.0
        %811 = vmatprep.subr.mxu0 0.0
        %812 = vmatpush1.msra.mxu0 0.0
        %813 = vmatprep.subr.mxu0 0.0
        %814 = vmatpush1.msra.mxu0 0.0
        %815 = vmatprep.subr.mxu0 0.0
        %816 = vmatpush1.msra.mxu0 0.0
        %817 = vmatprep.subr.mxu0 0.0
        %818 = vmatpush1.msra.mxu0 0.0
        %819 = vmatprep.subr.mxu0 0.0
        %820 = vmatpush1.msra.mxu0 0.0
        %821 = vmatprep.subr.mxu0 0.0
        %822 = vmatpush1.msra.mxu0 0.0
        %823 = vmatprep.subr.mxu0 0.0
        %824 = vmatpush1.msra.mxu0 0.0
        %825 = vmatprep.subr.mxu0 0.0
        %826 = vmatpush1.msra.mxu0 0.0
        %827 = vmatprep.subr.mxu0 0.0
        %828 = vmatpush1.msra.mxu0 0.0
        %829 = vmatprep.subr.mxu0 0.0
        %830 = vmatpush1.msra.mxu0 0.0
        %831 = vmatprep.subr.mxu0 0.0
        %832 = vmatpush1.msra.mxu0 0.0
        %833 = vmatprep.subr.mxu0 0.0
        %834 = vmatpush1.msra.mxu0 0.0
        %835 = vmatprep.subr.mxu0 0.0
        %836 = vmatpush1.msra.mxu0 0.0
        %837 = vmatprep.subr.mxu0 0.0
        %838 = vmatpush1.msra.mxu0 0.0
        %839 = vmatprep.subr.mxu0 0.0
        %840 = vmatpush1.msra.mxu0 0.0
        %841 = vmatprep.subr.mxu0 0.0
        %842 = vmatpush1.msra.mxu0 0.0
        %843 = vmatprep.subr.mxu0 0.0
        %844 = vmatpush1.msra.mxu0 0.0
        %845 = vmatprep.subr.mxu0 0.0
        %846 = vmatpush1.msra.mxu0 0.0
        %847 = vmatprep.subr.mxu0 0.0
        %848 = vmatpush1.msra.mxu0 0.0
        %849 = vmatprep.subr.mxu0 0.0
        %850 = vmatpush1.msra.mxu0 0.0
        %851 = vmatprep.subr.mxu0 0.0
        %852 = vmatpush1.msra.mxu0 0.0
        %853 = vmatprep.subr.mxu0 0.0
        %854 = vmatpush1.msra.mxu0 0.0
        %855 = vmatprep.subr.mxu0 0.0
        %856 = vmatpush1.msra.mxu0 0.0
        %857 = vmatprep.subr.mxu0 0.0
        %858 = vmatpush1.msra.mxu0 0.0
        %859 = vmatprep.subr.mxu0 0.0
        %860 = vmatpush1.msra.mxu0 0.0
        %861 = vmatprep.subr.mxu0 0.0
        %862 = vmatpush1.msra.mxu0 0.0
        %863 = vmatprep.subr.mxu0 0.0
        %864 = vmatpush1.msra.mxu0 0.0
        %865 = vmatprep.subr.mxu0 0.0
        %866 = vmatpush1.msra.mxu0 0.0
        %867 = vmatprep.subr.mxu0 0.0
        %868 = vmatpush1.msra.mxu0 0.0
        %869 = vmatprep.mubr.f32.mxu0 0.0
        %870 = vmatmul.mubr.f32.gmra.mrb[0].mxu0 %v803
        %v871 = vpop.f32.mrb[0].mxu0
        %v872 = vadd.f32 0.0, %v871
        %v873 = vpop.f32.mrb[0].mxu0
        %874 = vdwg.mxu0
        %v875 = vld [vmem:[#allocation3] sm:$0xff]
        %877 = vset.pattern.permute.xlu0 0
        %878 = vperm.xlu0 %877, %v783
        %v879 = vpop.permute.xlu0 %878
        %v881 = vmul.f32 %v879, %v875
        %v882 = vadd.f32 %v881, %v872
        %883 = vst.msk [vmem:[#allocation3] sm:$0xff] %vm697, %v882
        %v884 = vld [vmem:[#allocation2] sm:$0xff]
        %886 = vrot.lane.b32.xlu0 %v884, 120
        %v887 = vpop.permute.xlu0 %886
        %888 = vrot.lane.b32.xlu0 %v616, 120
        %v889 = vpop.permute.xlu0 %888
        %v890 = vsel %vm697, %v887, 0
        %v892 = vsel %vm697, %v889, 0
        %894 = vmatprep.subr.mxu0 0.0
        %895 = vmatpush1.xpose.msra.mxu0 %v892
        %896 = vmatprep.subr.mxu0 0.0
        %897 = vmatpush1.xpose.msra.mxu0 0.0
        %898 = vmatprep.subr.mxu0 0.0
        %899 = vmatpush1.xpose.msra.mxu0 0.0
        %900 = vmatprep.subr.mxu0 0.0
        %901 = vmatpush1.xpose.msra.mxu0 0.0
        %902 = vmatprep.subr.mxu0 0.0
        %903 = vmatpush1.xpose.msra.mxu0 0.0
        %904 = vmatprep.subr.mxu0 0.0
        %905 = vmatpush1.xpose.msra.mxu0 0.0
        %906 = vmatprep.subr.mxu0 0.0
        %907 = vmatpush1.xpose.msra.mxu0 0.0
        %908 = vmatprep.subr.mxu0 0.0
        %909 = vmatpush1.xpose.msra.mxu0 0.0
        %910 = vmatprep.subr.mxu0 0.0
        %911 = vmatpush1.xpose.msra.mxu0 0.0
        %912 = vmatprep.subr.mxu0 0.0
        %913 = vmatpush1.xpose.msra.mxu0 0.0
        %914 = vmatprep.subr.mxu0 0.0
        %915 = vmatpush1.xpose.msra.mxu0 0.0
        %916 = vmatprep.subr.mxu0 0.0
        %917 = vmatpush1.xpose.msra.mxu0 0.0
        %918 = vmatprep.subr.mxu0 0.0
        %919 = vmatpush1.xpose.msra.mxu0 0.0
        %920 = vmatprep.subr.mxu0 0.0
        %921 = vmatpush1.xpose.msra.mxu0 0.0
        %922 = vmatprep.subr.mxu0 0.0
        %923 = vmatpush1.xpose.msra.mxu0 0.0
        %924 = vmatprep.subr.mxu0 0.0
        %925 = vmatpush1.xpose.msra.mxu0 0.0
        %926 = vmatprep.subr.mxu0 0.0
        %927 = vmatpush1.xpose.msra.mxu0 0.0
        %928 = vmatprep.subr.mxu0 0.0
        %929 = vmatpush1.xpose.msra.mxu0 0.0
        %930 = vmatprep.subr.mxu0 0.0
        %931 = vmatpush1.xpose.msra.mxu0 0.0
        %932 = vmatprep.subr.mxu0 0.0
        %933 = vmatpush1.xpose.msra.mxu0 0.0
        %934 = vmatprep.subr.mxu0 0.0
        %935 = vmatpush1.xpose.msra.mxu0 0.0
        %936 = vmatprep.subr.mxu0 0.0
        %937 = vmatpush1.xpose.msra.mxu0 0.0
        %938 = vmatprep.subr.mxu0 0.0
        %939 = vmatpush1.xpose.msra.mxu0 0.0
        %940 = vmatprep.subr.mxu0 0.0
        %941 = vmatpush1.xpose.msra.mxu0 0.0
        %942 = vmatprep.subr.mxu0 0.0
        %943 = vmatpush1.xpose.msra.mxu0 0.0
        %944 = vmatprep.subr.mxu0 0.0
        %945 = vmatpush1.xpose.msra.mxu0 0.0
        %946 = vmatprep.subr.mxu0 0.0
        %947 = vmatpush1.xpose.msra.mxu0 0.0
        %948 = vmatprep.subr.mxu0 0.0
        %949 = vmatpush1.xpose.msra.mxu0 0.0
        %950 = vmatprep.subr.mxu0 0.0
        %951 = vmatpush1.xpose.msra.mxu0 0.0
        %952 = vmatprep.subr.mxu0 0.0
        %953 = vmatpush1.xpose.msra.mxu0 0.0
        %954 = vmatprep.subr.mxu0 0.0
        %955 = vmatpush1.xpose.msra.mxu0 0.0
        %956 = vmatprep.subr.mxu0 0.0
        %957 = vmatpush1.xpose.msra.mxu0 0.0
        %958 = vmatprep.mubr.f32.mxu0 0.0
        %959 = vmatmul.mubr.f32.gmra.mrb[0].mxu0 %v890
        %v960 = vpop.f32.mrb[0].mxu0
        %v961 = vadd.f32 0.0, %v960
        %v962 = vpop.f32.mrb[0].mxu0
        %963 = vdwg.mxu0
        %v964 = vmul.f32 %v961, 0.35355338
        %s965 = scalar_lea.vmem [#allocation4], 8
        %v966 = vld [vmem:[%s965] sm:$0xff]
        %s967 = scalar_lea.vmem [#allocation5], 8
        %v968 = vld [vmem:[%s967] sm:$0xff]
        %v969 = vsel %vm697, %v964, -inf
        %970 = vmax.xlane.f32.xlu0 %v969
        %v971 = vpop.xlane.xlu0 %970
        %v972 = vmax.f32 %v966, %v971
        %v973 = vsub.f32 %v966, %v972
        %v974 = vmul.f32 %v973, 1.442695
        %v975 = vpow.pop %v974
        %977 = vset.pattern.permute.xlu0 0
        %978 = vperm.xlu0 %977, %v972
        %v979 = vpop.permute.xlu0 %978
        %v981 = vsub.f32 %v964, %v979
        %v982 = vmul.f32 %v981, 1.442695
        %v983 = vpow.pop %v982
        %v984 = vmul.f32 %v975, %v968
        %v985 = vsel %vm697, %v983, 0.0
        %986 = vadd.xlane.f32.xlu0 %v985
        %v987 = vpop.xlane.xlu0 %986
        %v988 = vadd.f32 %v984, %v987
        %989 = vst.msk [vmem:[%s967] sm:$0xff] %vm797, %v988
        %990 = vst.msk [vmem:[%s965] sm:$0xff] %vm797, %v972
        %vm991 = vcmp.gt.f32.partialorder %v964, 0.0
        %v992 = vsel %vm991, %v983, 0.0
        %994 = vrot.lane.b32.xlu0 %v693, 120
        %v995 = vpop.permute.xlu0 %994
        %v998 = vsel %vm697, %v992, 0
        %1000 = vmatprep.subr.mxu0 0.0
        %1001 = vmatpush1.msra.mxu0 %v995
        %1002 = vmatprep.subr.mxu0 0.0
        %1003 = vmatpush1.msra.mxu0 0.0
        %1004 = vmatprep.subr.mxu0 0.0
        %1005 = vmatpush1.msra.mxu0 0.0
        %1006 = vmatprep.subr.mxu0 0.0
        %1007 = vmatpush1.msra.mxu0 0.0
        %1008 = vmatprep.subr.mxu0 0.0
        %1009 = vmatpush1.msra.mxu0 0.0
        %1010 = vmatprep.subr.mxu0 0.0
        %1011 = vmatpush1.msra.mxu0 0.0
        %1012 = vmatprep.subr.mxu0 0.0
        %1013 = vmatpush1.msra.mxu0 0.0
        %1014 = vmatprep.subr.mxu0 0.0
        %1015 = vmatpush1.msra.mxu0 0.0
        %1016 = vmatprep.subr.mxu0 0.0
        %1017 = vmatpush1.msra.mxu0 0.0
        %1018 = vmatprep.subr.mxu0 0.0
        %1019 = vmatpush1.msra.mxu0 0.0
        %1020 = vmatprep.subr.mxu0 0.0
        %1021 = vmatpush1.msra.mxu0 0.0
        %1022 = vmatprep.subr.mxu0 0.0
        %1023 = vmatpush1.msra.mxu0 0.0
        %1024 = vmatprep.subr.mxu0 0.0
        %1025 = vmatpush1.msra.mxu0 0.0
        %1026 = vmatprep.subr.mxu0 0.0
        %1027 = vmatpush1.msra.mxu0 0.0
        %1028 = vmatprep.subr.mxu0 0.0
        %1029 = vmatpush1.msra.mxu0 0.0
        %1030 = vmatprep.subr.mxu0 0.0
        %1031 = vmatpush1.msra.mxu0 0.0
        %1032 = vmatprep.subr.mxu0 0.0
        %1033 = vmatpush1.msra.mxu0 0.0
        %1034 = vmatprep.subr.mxu0 0.0
        %1035 = vmatpush1.msra.mxu0 0.0
        %1036 = vmatprep.subr.mxu0 0.0
        %1037 = vmatpush1.msra.mxu0 0.0
        %1038 = vmatprep.subr.mxu0 0.0
        %1039 = vmatpush1.msra.mxu0 0.0
        %1040 = vmatprep.subr.mxu0 0.0
        %1041 = vmatpush1.msra.mxu0 0.0
        %1042 = vmatprep.subr.mxu0 0.0
        %1043 = vmatpush1.msra.mxu0 0.0
        %1044 = vmatprep.subr.mxu0 0.0
        %1045 = vmatpush1.msra.mxu0 0.0
        %1046 = vmatprep.subr.mxu0 0.0
        %1047 = vmatpush1.msra.mxu0 0.0
        %1048 = vmatprep.subr.mxu0 0.0
        %1049 = vmatpush1.msra.mxu0 0.0
        %1050 = vmatprep.subr.mxu0 0.0
        %1051 = vmatpush1.msra.mxu0 0.0
        %1052 = vmatprep.subr.mxu0 0.0
        %1053 = vmatpush1.msra.mxu0 0.0
        %1054 = vmatprep.subr.mxu0 0.0
        %1055 = vmatpush1.msra.mxu0 0.0
        %1056 = vmatprep.subr.mxu0 0.0
        %1057 = vmatpush1.msra.mxu0 0.0
        %1058 = vmatprep.subr.mxu0 0.0
        %1059 = vmatpush1.msra.mxu0 0.0
        %1060 = vmatprep.subr.mxu0 0.0
        %1061 = vmatpush1.msra.mxu0 0.0
        %1062 = vmatprep.subr.mxu0 0.0
        %1063 = vmatpush1.msra.mxu0 0.0
        %1064 = vmatprep.mubr.f32.mxu0 0.0
        %1065 = vmatmul.mubr.f32.gmra.mrb[0].mxu0 %v998
        %v1066 = vpop.f32.mrb[0].mxu0
        %v1067 = vadd.f32 0.0, %v1066
        %v1068 = vpop.f32.mrb[0].mxu0
        %1069 = vdwg.mxu0
        %s1070 = scalar_lea.vmem [#allocation3], 8
        %v1071 = vld [vmem:[%s1070] sm:$0xff]
        %1073 = vset.pattern.permute.xlu0 0
        %1074 = vperm.xlu0 %1073, %v975
        %v1075 = vpop.permute.xlu0 %1074
        %v1077 = vmul.f32 %v1075, %v1071
        %v1078 = vadd.f32 %v1077, %v1067
        %1079 = vst.msk [vmem:[%s1070] sm:$0xff] %vm697, %v1078
        %v1080 = vld [vmem:[#allocation2] sm:$0xff]
        %1082 = vrot.lane.b32.xlu0 %v1080, 112
        %v1083 = vpop.permute.xlu0 %1082
        %1084 = vrot.lane.b32.xlu0 %v616, 112
        %v1085 = vpop.permute.xlu0 %1084
        %v1086 = vsel %vm697, %v1083, 0
        %v1088 = vsel %vm697, %v1085, 0
        %1090 = vmatprep.subr.mxu0 0.0
        %1091 = vmatpush1.xpose.msra.mxu0 %v1088
        %1092 = vmatprep.subr.mxu0 0.0
        %1093 = vmatpush1.xpose.msra.mxu0 0.0
        %1094 = vmatprep.subr.mxu0 0.0
        %1095 = vmatpush1.xpose.msra.mxu0 0.0
        %1096 = vmatprep.subr.mxu0 0.0
        %1097 = vmatpush1.xpose.msra.mxu0 0.0
        %1098 = vmatprep.subr.mxu0 0.0
        %1099 = vmatpush1.xpose.msra.mxu0 0.0
        %1100 = vmatprep.subr.mxu0 0.0
        %1101 = vmatpush1.xpose.msra.mxu0 0.0
        %1102 = vmatprep.subr.mxu0 0.0
        %1103 = vmatpush1.xpose.msra.mxu0 0.0
        %1104 = vmatprep.subr.mxu0 0.0
        %1105 = vmatpush1.xpose.msra.mxu0 0.0
        %1106 = vmatprep.subr.mxu0 0.0
        %1107 = vmatpush1.xpose.msra.mxu0 0.0
        %1108 = vmatprep.subr.mxu0 0.0
        %1109 = vmatpush1.xpose.msra.mxu0 0.0
        %1110 = vmatprep.subr.mxu0 0.0
        %1111 = vmatpush1.xpose.msra.mxu0 0.0
        %1112 = vmatprep.subr.mxu0 0.0
        %1113 = vmatpush1.xpose.msra.mxu0 0.0
        %1114 = vmatprep.subr.mxu0 0.0
        %1115 = vmatpush1.xpose.msra.mxu0 0.0
        %1116 = vmatprep.subr.mxu0 0.0
        %1117 = vmatpush1.xpose.msra.mxu0 0.0
        %1118 = vmatprep.subr.mxu0 0.0
        %1119 = vmatpush1.xpose.msra.mxu0 0.0
        %1120 = vmatprep.subr.mxu0 0.0
        %1121 = vmatpush1.xpose.msra.mxu0 0.0
        %1122 = vmatprep.subr.mxu0 0.0
        %1123 = vmatpush1.xpose.msra.mxu0 0.0
        %1124 = vmatprep.subr.mxu0 0.0
        %1125 = vmatpush1.xpose.msra.mxu0 0.0
        %1126 = vmatprep.subr.mxu0 0.0
        %1127 = vmatpush1.xpose.msra.mxu0 0.0
        %1128 = vmatprep.subr.mxu0 0.0
        %1129 = vmatpush1.xpose.msra.mxu0 0.0
        %1130 = vmatprep.subr.mxu0 0.0
        %1131 = vmatpush1.xpose.msra.mxu0 0.0
        %1132 = vmatprep.subr.mxu0 0.0
        %1133 = vmatpush1.xpose.msra.mxu0 0.0
        %1134 = vmatprep.subr.mxu0 0.0
        %1135 = vmatpush1.xpose.msra.mxu0 0.0
        %1136 = vmatprep.subr.mxu0 0.0
        %1137 = vmatpush1.xpose.msra.mxu0 0.0
        %1138 = vmatprep.subr.mxu0 0.0
        %1139 = vmatpush1.xpose.msra.mxu0 0.0
        %1140 = vmatprep.subr.mxu0 0.0
        %1141 = vmatpush1.xpose.msra.mxu0 0.0
        %1142 = vmatprep.subr.mxu0 0.0
        %1143 = vmatpush1.xpose.msra.mxu0 0.0
        %1144 = vmatprep.subr.mxu0 0.0
        %1145 = vmatpush1.xpose.msra.mxu0 0.0
        %1146 = vmatprep.subr.mxu0 0.0
        %1147 = vmatpush1.xpose.msra.mxu0 0.0
        %1148 = vmatprep.subr.mxu0 0.0
        %1149 = vmatpush1.xpose.msra.mxu0 0.0
        %1150 = vmatprep.subr.mxu0 0.0
        %1151 = vmatpush1.xpose.msra.mxu0 0.0
        %1152 = vmatprep.subr.mxu0 0.0
        %1153 = vmatpush1.xpose.msra.mxu0 0.0
        %1154 = vmatprep.mubr.f32.mxu0 0.0
        %1155 = vmatmul.mubr.f32.gmra.mrb[0].mxu0 %v1086
        %v1156 = vpop.f32.mrb[0].mxu0
        %v1157 = vadd.f32 0.0, %v1156
        %v1158 = vpop.f32.mrb[0].mxu0
        %1159 = vdwg.mxu0
        %v1160 = vmul.f32 %v1157, 0.35355338
        %s1161 = scalar_lea.vmem [#allocation4], 16
        %v1162 = vld [vmem:[%s1161] sm:$0xff]
        %s1163 = scalar_lea.vmem [#allocation5], 16
        %v1164 = vld [vmem:[%s1163] sm:$0xff]
        %v1165 = vsel %vm697, %v1160, -inf
        %1166 = vmax.xlane.f32.xlu0 %v1165
        %v1167 = vpop.xlane.xlu0 %1166
        %v1168 = vmax.f32 %v1162, %v1167
        %v1169 = vsub.f32 %v1162, %v1168
        %v1170 = vmul.f32 %v1169, 1.442695
        %v1171 = vpow.pop %v1170
        %1173 = vset.pattern.permute.xlu0 0
        %1174 = vperm.xlu0 %1173, %v1168
        %v1175 = vpop.permute.xlu0 %1174
        %v1177 = vsub.f32 %v1160, %v1175
        %v1178 = vmul.f32 %v1177, 1.442695
        %v1179 = vpow.pop %v1178
        %v1180 = vmul.f32 %v1171, %v1164
        %v1181 = vsel %vm697, %v1179, 0.0
        %1182 = vadd.xlane.f32.xlu0 %v1181
        %v1183 = vpop.xlane.xlu0 %1182
        %v1184 = vadd.f32 %v1180, %v1183
        %1185 = vst.msk [vmem:[%s1163] sm:$0xff] %vm797, %v1184
        %1186 = vst.msk [vmem:[%s1161] sm:$0xff] %vm797, %v1168
        %vm1187 = vcmp.gt.f32.partialorder %v1160, 0.0
        %v1188 = vsel %vm1187, %v1179, 0.0
        %1189 = vrot.lane.b32.xlu0 %v693, 112
        %v1190 = vpop.permute.xlu0 %1189
        %v1193 = vsel %vm697, %v1188, 0
        %1195 = vmatprep.subr.mxu0 0.0
        %1196 = vmatpush1.msra.mxu0 %v1190
        %1197 = vmatprep.subr.mxu0 0.0
        %1198 = vmatpush1.msra.mxu0 0.0
        %1199 = vmatprep.subr.mxu0 0.0
        %1200 = vmatpush1.msra.mxu0 0.0
        %1201 = vmatprep.subr.mxu0 0.0
        %1202 = vmatpush1.msra.mxu0 0.0
        %1203 = vmatprep.subr.mxu0 0.0
        %1204 = vmatpush1.msra.mxu0 0.0
        %1205 = vmatprep.subr.mxu0 0.0
        %1206 = vmatpush1.msra.mxu0 0.0
        %1207 = vmatprep.subr.mxu0 0.0
        %1208 = vmatpush1.msra.mxu0 0.0
        %1209 = vmatprep.subr.mxu0 0.0
        %1210 = vmatpush1.msra.mxu0 0.0
        %1211 = vmatprep.subr.mxu0 0.0
        %1212 = vmatpush1.msra.mxu0 0.0
        %1213 = vmatprep.subr.mxu0 0.0
        %1214 = vmatpush1.msra.mxu0 0.0
        %1215 = vmatprep.subr.mxu0 0.0
        %1216 = vmatpush1.msra.mxu0 0.0
        %1217 = vmatprep.subr.mxu0 0.0
        %1218 = vmatpush1.msra.mxu0 0.0
        %1219 = vmatprep.subr.mxu0 0.0
        %1220 = vmatpush1.msra.mxu0 0.0
        %1221 = vmatprep.subr.mxu0 0.0
        %1222 = vmatpush1.msra.mxu0 0.0
        %1223 = vmatprep.subr.mxu0 0.0
        %1224 = vmatpush1.msra.mxu0 0.0
        %1225 = vmatprep.subr.mxu0 0.0
        %1226 = vmatpush1.msra.mxu0 0.0
        %1227 = vmatprep.subr.mxu0 0.0
        %1228 = vmatpush1.msra.mxu0 0.0
        %1229 = vmatprep.subr.mxu0 0.0
        %1230 = vmatpush1.msra.mxu0 0.0
        %1231 = vmatprep.subr.mxu0 0.0
        %1232 = vmatpush1.msra.mxu0 0.0
        %1233 = vmatprep.subr.mxu0 0.0
        %1234 = vmatpush1.msra.mxu0 0.0
        %1235 = vmatprep.subr.mxu0 0.0
        %1236 = vmatpush1.msra.mxu0 0.0
        %1237 = vmatprep.subr.mxu0 0.0
        %1238 = vmatpush1.msra.mxu0 0.0
        %1239 = vmatprep.subr.mxu0 0.0
        %1240 = vmatpush1.msra.mxu0 0.0
        %1241 = vmatprep.subr.mxu0 0.0
        %1242 = vmatpush1.msra.mxu0 0.0
        %1243 = vmatprep.subr.mxu0 0.0
        %1244 = vmatpush1.msra.mxu0 0.0
        %1245 = vmatprep.subr.mxu0 0.0
        %1246 = vmatpush1.msra.mxu0 0.0
        %1247 = vmatprep.subr.mxu0 0.0
        %1248 = vmatpush1.msra.mxu0 0.0
        %1249 = vmatprep.subr.mxu0 0.0
        %1250 = vmatpush1.msra.mxu0 0.0
        %1251 = vmatprep.subr.mxu0 0.0
        %1252 = vmatpush1.msra.mxu0 0.0
        %1253 = vmatprep.subr.mxu0 0.0
        %1254 = vmatpush1.msra.mxu0 0.0
        %1255 = vmatprep.subr.mxu0 0.0
        %1256 = vmatpush1.msra.mxu0 0.0
        %1257 = vmatprep.subr.mxu0 0.0
        %1258 = vmatpush1.msra.mxu0 0.0
        %1259 = vmatprep.mubr.f32.mxu0 0.0
        %1260 = vmatmul.mubr.f32.gmra.mrb[0].mxu0 %v1193
        %v1261 = vpop.f32.mrb[0].mxu0
        %v1262 = vadd.f32 0.0, %v1261
        %v1263 = vpop.f32.mrb[0].mxu0
        %1264 = vdwg.mxu0
        %s1265 = scalar_lea.vmem [#allocation3], 16
        %v1266 = vld [vmem:[%s1265] sm:$0xff]
        %1268 = vset.pattern.permute.xlu0 0
        %1269 = vperm.xlu0 %1268, %v1171
        %v1270 = vpop.permute.xlu0 %1269
        %v1272 = vmul.f32 %v1270, %v1266
        %v1273 = vadd.f32 %v1272, %v1262
        %1274 = vst.msk [vmem:[%s1265] sm:$0xff] %vm697, %v1273
        %v1275 = vld [vmem:[#allocation2] sm:$0xff]
        %1277 = vrot.lane.b32.xlu0 %v1275, 104
        %v1278 = vpop.permute.xlu0 %1277
        %1279 = vrot.lane.b32.xlu0 %v616, 104
        %v1280 = vpop.permute.xlu0 %1279
        %v1281 = vsel %vm697, %v1278, 0
        %v1283 = vsel %vm697, %v1280, 0
        %1285 = vmatprep.subr.mxu0 0.0
        %1286 = vmatpush1.xpose.msra.mxu0 %v1283
        %1287 = vmatprep.subr.mxu0 0.0
        %1288 = vmatpush1.xpose.msra.mxu0 0.0
        %1289 = vmatprep.subr.mxu0 0.0
        %1290 = vmatpush1.xpose.msra.mxu0 0.0
        %1291 = vmatprep.subr.mxu0 0.0
        %1292 = vmatpush1.xpose.msra.mxu0 0.0
        %1293 = vmatprep.subr.mxu0 0.0
        %1294 = vmatpush1.xpose.msra.mxu0 0.0
        %1295 = vmatprep.subr.mxu0 0.0
        %1296 = vmatpush1.xpose.msra.mxu0 0.0
        %1297 = vmatprep.subr.mxu0 0.0
        %1298 = vmatpush1.xpose.msra.mxu0 0.0
        %1299 = vmatprep.subr.mxu0 0.0
        %1300 = vmatpush1.xpose.msra.mxu0 0.0
        %1301 = vmatprep.subr.mxu0 0.0
        %1302 = vmatpush1.xpose.msra.mxu0 0.0
        %1303 = vmatprep.subr.mxu0 0.0
        %1304 = vmatpush1.xpose.msra.mxu0 0.0
        %1305 = vmatprep.subr.mxu0 0.0
        %1306 = vmatpush1.xpose.msra.mxu0 0.0
        %1307 = vmatprep.subr.mxu0 0.0
        %1308 = vmatpush1.xpose.msra.mxu0 0.0
        %1309 = vmatprep.subr.mxu0 0.0
        %1310 = vmatpush1.xpose.msra.mxu0 0.0
        %1311 = vmatprep.subr.mxu0 0.0
        %1312 = vmatpush1.xpose.msra.mxu0 0.0
        %1313 = vmatprep.subr.mxu0 0.0
        %1314 = vmatpush1.xpose.msra.mxu0 0.0
        %1315 = vmatprep.subr.mxu0 0.0
        %1316 = vmatpush1.xpose.msra.mxu0 0.0
        %1317 = vmatprep.subr.mxu0 0.0
        %1318 = vmatpush1.xpose.msra.mxu0 0.0
        %1319 = vmatprep.subr.mxu0 0.0
        %1320 = vmatpush1.xpose.msra.mxu0 0.0
        %1321 = vmatprep.subr.mxu0 0.0
        %1322 = vmatpush1.xpose.msra.mxu0 0.0
        %1323 = vmatprep.subr.mxu0 0.0
        %1324 = vmatpush1.xpose.msra.mxu0 0.0
        %1325 = vmatprep.subr.mxu0 0.0
        %1326 = vmatpush1.xpose.msra.mxu0 0.0
        %1327 = vmatprep.subr.mxu0 0.0
        %1328 = vmatpush1.xpose.msra.mxu0 0.0
        %1329 = vmatprep.subr.mxu0 0.0
        %1330 = vmatpush1.xpose.msra.mxu0 0.0
        %1331 = vmatprep.subr.mxu0 0.0
        %1332 = vmatpush1.xpose.msra.mxu0 0.0
        %1333 = vmatprep.subr.mxu0 0.0
        %1334 = vmatpush1.xpose.msra.mxu0 0.0
        %1335 = vmatprep.subr.mxu0 0.0
        %1336 = vmatpush1.xpose.msra.mxu0 0.0
        %1337 = vmatprep.subr.mxu0 0.0
        %1338 = vmatpush1.xpose.msra.mxu0 0.0
        %1339 = vmatprep.subr.mxu0 0.0
        %1340 = vmatpush1.xpose.msra.mxu0 0.0
        %1341 = vmatprep.subr.mxu0 0.0
        %1342 = vmatpush1.xpose.msra.mxu0 0.0
        %1343 = vmatprep.subr.mxu0 0.0
        %1344 = vmatpush1.xpose.msra.mxu0 0.0
        %1345 = vmatprep.subr.mxu0 0.0
        %1346 = vmatpush1.xpose.msra.mxu0 0.0
        %1347 = vmatprep.subr.mxu0 0.0
        %1348 = vmatpush1.xpose.msra.mxu0 0.0
        %1349 = vmatprep.mubr.f32.mxu0 0.0
        %1350 = vmatmul.mubr.f32.gmra.mrb[0].mxu0 %v1281
        %v1351 = vpop.f32.mrb[0].mxu0
        %v1352 = vadd.f32 0.0, %v1351
        %v1353 = vpop.f32.mrb[0].mxu0
        %1354 = vdwg.mxu0
        %v1355 = vmul.f32 %v1352, 0.35355338
        %s1356 = scalar_lea.vmem [#allocation4], 24
        %v1357 = vld [vmem:[%s1356] sm:$0xff]
        %s1358 = scalar_lea.vmem [#allocation5], 24
        %v1359 = vld [vmem:[%s1358] sm:$0xff]
        %v1360 = vsel %vm697, %v1355, -inf
        %1361 = vmax.xlane.f32.xlu0 %v1360
        %v1362 = vpop.xlane.xlu0 %1361
        %v1363 = vmax.f32 %v1357, %v1362
        %v1364 = vsub.f32 %v1357, %v1363
        %v1365 = vmul.f32 %v1364, 1.442695
        %v1366 = vpow.pop %v1365
        %1368 = vset.pattern.permute.xlu0 0
        %1369 = vperm.xlu0 %1368, %v1363
        %v1370 = vpop.permute.xlu0 %1369
        %v1372 = vsub.f32 %v1355, %v1370
        %v1373 = vmul.f32 %v1372, 1.442695
        %v1374 = vpow.pop %v1373
        %v1375 = vmul.f32 %v1366, %v1359
        %v1376 = vsel %vm697, %v1374, 0.0
        %1377 = vadd.xlane.f32.xlu0 %v1376
        %v1378 = vpop.xlane.xlu0 %1377
        %v1379 = vadd.f32 %v1375, %v1378
        %1380 = vst.msk [vmem:[%s1358] sm:$0xff] %vm797, %v1379
        %1381 = vst.msk [vmem:[%s1356] sm:$0xff] %vm797, %v1363
        %vm1382 = vcmp.gt.f32.partialorder %v1355, 0.0
        %v1383 = vsel %vm1382, %v1374, 0.0
        %1384 = vrot.lane.b32.xlu0 %v693, 104
        %v1385 = vpop.permute.xlu0 %1384
        %v1388 = vsel %vm697, %v1383, 0
        %1390 = vmatprep.subr.mxu0 0.0
        %1391 = vmatpush1.msra.mxu0 %v1385
        %1392 = vmatprep.subr.mxu0 0.0
        %1393 = vmatpush1.msra.mxu0 0.0
        %1394 = vmatprep.subr.mxu0 0.0
        %1395 = vmatpush1.msra.mxu0 0.0
        %1396 = vmatprep.subr.mxu0 0.0
        %1397 = vmatpush1.msra.mxu0 0.0
        %1398 = vmatprep.subr.mxu0 0.0
        %1399 = vmatpush1.msra.mxu0 0.0
        %1400 = vmatprep.subr.mxu0 0.0
        %1401 = vmatpush1.msra.mxu0 0.0
        %1402 = vmatprep.subr.mxu0 0.0
        %1403 = vmatpush1.msra.mxu0 0.0
        %1404 = vmatprep.subr.mxu0 0.0
        %1405 = vmatpush1.msra.mxu0 0.0
        %1406 = vmatprep.subr.mxu0 0.0
        %1407 = vmatpush1.msra.mxu0 0.0
        %1408 = vmatprep.subr.mxu0 0.0
        %1409 = vmatpush1.msra.mxu0 0.0
        %1410 = vmatprep.subr.mxu0 0.0
        %1411 = vmatpush1.msra.mxu0 0.0
        %1412 = vmatprep.subr.mxu0 0.0
        %1413 = vmatpush1.msra.mxu0 0.0
        %1414 = vmatprep.subr.mxu0 0.0
        %1415 = vmatpush1.msra.mxu0 0.0
        %1416 = vmatprep.subr.mxu0 0.0
        %1417 = vmatpush1.msra.mxu0 0.0
        %1418 = vmatprep.subr.mxu0 0.0
        %1419 = vmatpush1.msra.mxu0 0.0
        %1420 = vmatprep.subr.mxu0 0.0
        %1421 = vmatpush1.msra.mxu0 0.0
        %1422 = vmatprep.subr.mxu0 0.0
        %1423 = vmatpush1.msra.mxu0 0.0
        %1424 = vmatprep.subr.mxu0 0.0
        %1425 = vmatpush1.msra.mxu0 0.0
        %1426 = vmatprep.subr.mxu0 0.0
        %1427 = vmatpush1.msra.mxu0 0.0
        %1428 = vmatprep.subr.mxu0 0.0
        %1429 = vmatpush1.msra.mxu0 0.0
        %1430 = vmatprep.subr.mxu0 0.0
        %1431 = vmatpush1.msra.mxu0 0.0
        %1432 = vmatprep.subr.mxu0 0.0
        %1433 = vmatpush1.msra.mxu0 0.0
        %1434 = vmatprep.subr.mxu0 0.0
        %1435 = vmatpush1.msra.mxu0 0.0
        %1436 = vmatprep.subr.mxu0 0.0
        %1437 = vmatpush1.msra.mxu0 0.0
        %1438 = vmatprep.subr.mxu0 0.0
        %1439 = vmatpush1.msra.mxu0 0.0
        %1440 = vmatprep.subr.mxu0 0.0
        %1441 = vmatpush1.msra.mxu0 0.0
        %1442 = vmatprep.subr.mxu0 0.0
        %1443 = vmatpush1.msra.mxu0 0.0
        %1444 = vmatprep.subr.mxu0 0.0
        %1445 = vmatpush1.msra.mxu0 0.0
        %1446 = vmatprep.subr.mxu0 0.0
        %1447 = vmatpush1.msra.mxu0 0.0
        %1448 = vmatprep.subr.mxu0 0.0
        %1449 = vmatpush1.msra.mxu0 0.0
        %1450 = vmatprep.subr.mxu0 0.0
        %1451 = vmatpush1.msra.mxu0 0.0
        %1452 = vmatprep.subr.mxu0 0.0
        %1453 = vmatpush1.msra.mxu0 0.0
        %1454 = vmatprep.mubr.f32.mxu0 0.0
        %1455 = vmatmul.mubr.f32.gmra.mrb[0].mxu0 %v1388
        %v1456 = vpop.f32.mrb[0].mxu0
        %v1457 = vadd.f32 0.0, %v1456
        %v1458 = vpop.f32.mrb[0].mxu0
        %1459 = vdwg.mxu0
        %s1460 = scalar_lea.vmem [#allocation3], 24
        %v1461 = vld [vmem:[%s1460] sm:$0xff]
        %1463 = vset.pattern.permute.xlu0 0
        %1464 = vperm.xlu0 %1463, %v1366
        %v1465 = vpop.permute.xlu0 %1464
        %v1467 = vmul.f32 %v1465, %v1461
        %v1468 = vadd.f32 %v1467, %v1457
        %1469 = vst.msk [vmem:[%s1460] sm:$0xff] %vm697, %v1468
        // Predicated region
        $region81: #{tpu_custom_call.1} parent=47 // pred_check
          %p1470 = pneg %p441
        $region82: #{tpu_custom_call.1} parent=47 // pred_check_branch
          %1472 = sbr.rel (%p1470) target = $region84
        $region83: #{tpu_custom_call.1} parent=47 // pred_region
          %v1473 = vld [vmem:[#allocation5] sm:$0xff]
          %v1474 = vrcp.pop %v1473
          %v1475 = vld [vmem:[#allocation3] sm:$0xff]
          %1477 = vset.pattern.permute.xlu0 0
          %1478 = vperm.xlu0 %1477, %v1474
          %v1479 = vpop.permute.xlu0 %1478
          %v1481 = vmul.f32 %v1475, %v1479
          %v1482 = vld [vmem:[#allocation17] sm:$0xff]
          %v1483 = vld [vmem:[%s967] sm:$0xff]
          %v1484 = vrcp.pop %v1483
          %v1485 = vld [vmem:[%s1070] sm:$0xff]
          %1487 = vset.pattern.permute.xlu0 0
          %1488 = vperm.xlu0 %1487, %v1484
          %v1489 = vpop.permute.xlu0 %1488
          %v1491 = vmul.f32 %v1485, %v1489
          %v1492 = vld [vmem:[#allocation17 + $0x8] sm:$0xff]
          %v1494 = vsel %vm697, %v1491, 0
          %1496 = vmatprep.subr.mxu0 0.0
          %1497 = vmatpush1.msra.mxu0 %v1492
          %1498 = vmatprep.subr.mxu0 0.0
          %1499 = vmatpush1.msra.mxu0 0.0
          %1500 = vmatprep.subr.mxu0 0.0
          %1501 = vmatpush1.msra.mxu0 0.0
          %1502 = vmatprep.subr.mxu0 0.0
          %1503 = vmatpush1.msra.mxu0 0.0
          %1504 = vmatprep.subr.mxu0 0.0
          %1505 = vmatpush1.msra.mxu0 0.0
          %1506 = vmatprep.subr.mxu0 0.0
          %1507 = vmatpush1.msra.mxu0 0.0
          %1508 = vmatprep.subr.mxu0 0.0
          %1509 = vmatpush1.msra.mxu0 0.0
          %1510 = vmatprep.subr.mxu0 0.0
          %1511 = vmatpush1.msra.mxu0 0.0
          %1512 = vmatprep.subr.mxu0 0.0
          %1513 = vmatpush1.msra.mxu0 0.0
          %1514 = vmatprep.subr.mxu0 0.0
          %1515 = vmatpush1.msra.mxu0 0.0
          %1516 = vmatprep.subr.mxu0 0.0
          %1517 = vmatpush1.msra.mxu0 0.0
          %1518 = vmatprep.subr.mxu0 0.0
          %1519 = vmatpush1.msra.mxu0 0.0
          %1520 = vmatprep.subr.mxu0 0.0
          %1521 = vmatpush1.msra.mxu0 0.0
          %1522 = vmatprep.subr.mxu0 0.0
          %1523 = vmatpush1.msra.mxu0 0.0
          %1524 = vmatprep.subr.mxu0 0.0
          %1525 = vmatpush1.msra.mxu0 0.0
          %1526 = vmatprep.subr.mxu0 0.0
          %1527 = vmatpush1.msra.mxu0 0.0
          %1528 = vmatprep.subr.mxu0 0.0
          %1529 = vmatpush1.msra.mxu0 0.0
          %1530 = vmatprep.subr.mxu0 0.0
          %1531 = vmatpush1.msra.mxu0 0.0
          %1532 = vmatprep.subr.mxu0 0.0
          %1533 = vmatpush1.msra.mxu0 0.0
          %1534 = vmatprep.subr.mxu0 0.0
          %1535 = vmatpush1.msra.mxu0 0.0
          %1536 = vmatprep.subr.mxu0 0.0
          %1537 = vmatpush1.msra.mxu0 0.0
          %1538 = vmatprep.subr.mxu0 0.0
          %1539 = vmatpush1.msra.mxu0 0.0
          %1540 = vmatprep.subr.mxu0 0.0
          %1541 = vmatpush1.msra.mxu0 0.0
          %1542 = vmatprep.subr.mxu0 0.0
          %1543 = vmatpush1.msra.mxu0 0.0
          %1544 = vmatprep.subr.mxu0 0.0
          %1545 = vmatpush1.msra.mxu0 0.0
          %1546 = vmatprep.subr.mxu0 0.0
          %1547 = vmatpush1.msra.mxu0 0.0
          %1548 = vmatprep.subr.mxu0 0.0
          %1549 = vmatpush1.msra.mxu0 0.0
          %1550 = vmatprep.subr.mxu0 0.0
          %1551 = vmatpush1.msra.mxu0 0.0
          %1552 = vmatprep.subr.mxu0 0.0
          %1553 = vmatpush1.msra.mxu0 0.0
          %1554 = vmatprep.subr.mxu0 0.0
          %1555 = vmatpush1.msra.mxu0 0.0
          %1556 = vmatprep.subr.mxu0 0.0
          %1557 = vmatpush1.msra.mxu0 0.0
          %1558 = vmatprep.subr.mxu0 0.0
          %1559 = vmatpush1.msra.mxu0 0.0
          %1560 = vmatprep.mubr.f32.mxu0 0.0
          %1561 = vmatmul.mubr.f32.gmra.mrb[0].mxu0 %v1494
          %v1562 = vpop.f32.mrb[0].mxu0
          %v1563 = vadd.f32 0.0, %v1562
          %v1564 = vpop.f32.mrb[0].mxu0
          %1565 = vdwg.mxu0
          %v1567 = vsel %vm697, %v1481, 0
          %1569 = vmatprep.subr.mxu0 0.0
          %1570 = vmatpush1.msra.mxu0 %v1482
          %1571 = vmatprep.subr.mxu0 0.0
          %1572 = vmatpush1.msra.mxu0 0.0
          %1573 = vmatprep.subr.mxu0 0.0
          %1574 = vmatpush1.msra.mxu0 0.0
          %1575 = vmatprep.subr.mxu0 0.0
          %1576 = vmatpush1.msra.mxu0 0.0
          %1577 = vmatprep.subr.mxu0 0.0
          %1578 = vmatpush1.msra.mxu0 0.0
          %1579 = vmatprep.subr.mxu0 0.0
          %1580 = vmatpush1.msra.mxu0 0.0
          %1581 = vmatprep.subr.mxu0 0.0
          %1582 = vmatpush1.msra.mxu0 0.0
          %1583 = vmatprep.subr.mxu0 0.0
          %1584 = vmatpush1.msra.mxu0 0.0
          %1585 = vmatprep.subr.mxu0 0.0
          %1586 = vmatpush1.msra.mxu0 0.0
          %1587 = vmatprep.subr.mxu0 0.0
          %1588 = vmatpush1.msra.mxu0 0.0
          %1589 = vmatprep.subr.mxu0 0.0
          %1590 = vmatpush1.msra.mxu0 0.0
          %1591 = vmatprep.subr.mxu0 0.0
          %1592 = vmatpush1.msra.mxu0 0.0
          %1593 = vmatprep.subr.mxu0 0.0
          %1594 = vmatpush1.msra.mxu0 0.0
          %1595 = vmatprep.subr.mxu0 0.0
          %1596 = vmatpush1.msra.mxu0 0.0
          %1597 = vmatprep.subr.mxu0 0.0
          %1598 = vmatpush1.msra.mxu0 0.0
          %1599 = vmatprep.subr.mxu0 0.0
          %1600 = vmatpush1.msra.mxu0 0.0
          %1601 = vmatprep.subr.mxu0 0.0
          %1602 = vmatpush1.msra.mxu0 0.0
          %1603 = vmatprep.subr.mxu0 0.0
          %1604 = vmatpush1.msra.mxu0 0.0
          %1605 = vmatprep.subr.mxu0 0.0
          %1606 = vmatpush1.msra.mxu0 0.0
          %1607 = vmatprep.subr.mxu0 0.0
          %1608 = vmatpush1.msra.mxu0 0.0
          %1609 = vmatprep.subr.mxu0 0.0
          %1610 = vmatpush1.msra.mxu0 0.0
          %1611 = vmatprep.subr.mxu0 0.0
          %1612 = vmatpush1.msra.mxu0 0.0
          %1613 = vmatprep.subr.mxu0 0.0
          %1614 = vmatpush1.msra.mxu0 0.0
          %1615 = vmatprep.subr.mxu0 0.0
          %1616 = vmatpush1.msra.mxu0 0.0
          %1617 = vmatprep.subr.mxu0 0.0
          %1618 = vmatpush1.msra.mxu0 0.0
          %1619 = vmatprep.subr.mxu0 0.0
          %1620 = vmatpush1.msra.mxu0 0.0
          %1621 = vmatprep.subr.mxu0 0.0
          %1622 = vmatpush1.msra.mxu0 0.0
          %1623 = vmatprep.subr.mxu0 0.0
          %1624 = vmatpush1.msra.mxu0 0.0
          %1625 = vmatprep.subr.mxu0 0.0
          %1626 = vmatpush1.msra.mxu0 0.0
          %1627 = vmatprep.subr.mxu0 0.0
          %1628 = vmatpush1.msra.mxu0 0.0
          %1629 = vmatprep.subr.mxu0 0.0
          %1630 = vmatpush1.msra.mxu0 0.0
          %1631 = vmatprep.subr.mxu0 0.0
          %1632 = vmatpush1.msra.mxu0 0.0
          %1633 = vmatprep.mubr.f32.mxu0 0.0
          %1634 = vmatmul.mubr.f32.gmra.mrb[0].mxu0 %v1567
          %v1635 = vpop.f32.mrb[0].mxu0
          %v1636 = vadd.f32 %v1563, %v1635
          %v1637 = vpop.f32.mrb[0].mxu0
          %1638 = vdwg.mxu0
          %v1639 = vld [vmem:[%s1163] sm:$0xff]
          %v1640 = vrcp.pop %v1639
          %v1641 = vld [vmem:[%s1265] sm:$0xff]
          %1643 = vset.pattern.permute.xlu0 0
          %1644 = vperm.xlu0 %1643, %v1640
          %v1645 = vpop.permute.xlu0 %1644
          %v1647 = vmul.f32 %v1641, %v1645
          %v1648 = vld [vmem:[#allocation17 + $0x10] sm:$0xff]
          %v1650 = vsel %vm697, %v1647, 0
          %1652 = vmatprep.subr.mxu0 0.0
          %1653 = vmatpush1.msra.mxu0 %v1648
          %1654 = vmatprep.subr.mxu0 0.0
          %1655 = vmatpush1.msra.mxu0 0.0
          %1656 = vmatprep.subr.mxu0 0.0
          %1657 = vmatpush1.msra.mxu0 0.0
          %1658 = vmatprep.subr.mxu0 0.0
          %1659 = vmatpush1.msra.mxu0 0.0
          %1660 = vmatprep.subr.mxu0 0.0
          %1661 = vmatpush1.msra.mxu0 0.0
          %1662 = vmatprep.subr.mxu0 0.0
          %1663 = vmatpush1.msra.mxu0 0.0
          %1664 = vmatprep.subr.mxu0 0.0
          %1665 = vmatpush1.msra.mxu0 0.0
          %1666 = vmatprep.subr.mxu0 0.0
          %1667 = vmatpush1.msra.mxu0 0.0
          %1668 = vmatprep.subr.mxu0 0.0
          %1669 = vmatpush1.msra.mxu0 0.0
          %1670 = vmatprep.subr.mxu0 0.0
          %1671 = vmatpush1.msra.mxu0 0.0
          %1672 = vmatprep.subr.mxu0 0.0
          %1673 = vmatpush1.msra.mxu0 0.0
          %1674 = vmatprep.subr.mxu0 0.0
          %1675 = vmatpush1.msra.mxu0 0.0
          %1676 = vmatprep.subr.mxu0 0.0
          %1677 = vmatpush1.msra.mxu0 0.0
          %1678 = vmatprep.subr.mxu0 0.0
          %1679 = vmatpush1.msra.mxu0 0.0
          %1680 = vmatprep.subr.mxu0 0.0
          %1681 = vmatpush1.msra.mxu0 0.0
          %1682 = vmatprep.subr.mxu0 0.0
          %1683 = vmatpush1.msra.mxu0 0.0
          %1684 = vmatprep.subr.mxu0 0.0
          %1685 = vmatpush1.msra.mxu0 0.0
          %1686 = vmatprep.subr.mxu0 0.0
          %1687 = vmatpush1.msra.mxu0 0.0
          %1688 = vmatprep.subr.mxu0 0.0
          %1689 = vmatpush1.msra.mxu0 0.0
          %1690 = vmatprep.subr.mxu0 0.0
          %1691 = vmatpush1.msra.mxu0 0.0
          %1692 = vmatprep.subr.mxu0 0.0
          %1693 = vmatpush1.msra.mxu0 0.0
          %1694 = vmatprep.subr.mxu0 0.0
          %1695 = vmatpush1.msra.mxu0 0.0
          %1696 = vmatprep.subr.mxu0 0.0
          %1697 = vmatpush1.msra.mxu0 0.0
          %1698 = vmatprep.subr.mxu0 0.0
          %1699 = vmatpush1.msra.mxu0 0.0
          %1700 = vmatprep.subr.mxu0 0.0
          %1701 = vmatpush1.msra.mxu0 0.0
          %1702 = vmatprep.subr.mxu0 0.0
          %1703 = vmatpush1.msra.mxu0 0.0
          %1704 = vmatprep.subr.mxu0 0.0
          %1705 = vmatpush1.msra.mxu0 0.0
          %1706 = vmatprep.subr.mxu0 0.0
          %1707 = vmatpush1.msra.mxu0 0.0
          %1708 = vmatprep.subr.mxu0 0.0
          %1709 = vmatpush1.msra.mxu0 0.0
          %1710 = vmatprep.subr.mxu0 0.0
          %1711 = vmatpush1.msra.mxu0 0.0
          %1712 = vmatprep.subr.mxu0 0.0
          %1713 = vmatpush1.msra.mxu0 0.0
          %1714 = vmatprep.subr.mxu0 0.0
          %1715 = vmatpush1.msra.mxu0 0.0
          %1716 = vmatprep.mubr.f32.mxu0 0.0
          %1717 = vmatmul.mubr.f32.gmra.mrb[0].mxu0 %v1650
          %v1718 = vpop.f32.mrb[0].mxu0
          %v1719 = vadd.f32 0.0, %v1718
          %v1720 = vpop.f32.mrb[0].mxu0
          %1721 = vdwg.mxu0
          %v1722 = vadd.f32 %v1636, %v1719
          %v1723 = vld [vmem:[%s1358] sm:$0xff]
          %v1724 = vrcp.pop %v1723
          %v1725 = vld [vmem:[%s1460] sm:$0xff]
          %1727 = vset.pattern.permute.xlu0 0
          %1728 = vperm.xlu0 %1727, %v1724
          %v1729 = vpop.permute.xlu0 %1728
          %v1731 = vmul.f32 %v1725, %v1729
          %v1732 = vld [vmem:[#allocation17 + $0x18] sm:$0xff]
          %v1734 = vsel %vm697, %v1731, 0
          %1736 = vmatprep.subr.mxu0 0.0
          %1737 = vmatpush1.msra.mxu0 %v1732
          %1738 = vmatprep.subr.mxu0 0.0
          %1739 = vmatpush1.msra.mxu0 0.0
          %1740 = vmatprep.subr.mxu0 0.0
          %1741 = vmatpush1.msra.mxu0 0.0
          %1742 = vmatprep.subr.mxu0 0.0
          %1743 = vmatpush1.msra.mxu0 0.0
          %1744 = vmatprep.subr.mxu0 0.0
          %1745 = vmatpush1.msra.mxu0 0.0
          %1746 = vmatprep.subr.mxu0 0.0
          %1747 = vmatpush1.msra.mxu0 0.0
          %1748 = vmatprep.subr.mxu0 0.0
          %1749 = vmatpush1.msra.mxu0 0.0
          %1750 = vmatprep.subr.mxu0 0.0
          %1751 = vmatpush1.msra.mxu0 0.0
          %1752 = vmatprep.subr.mxu0 0.0
          %1753 = vmatpush1.msra.mxu0 0.0
          %1754 = vmatprep.subr.mxu0 0.0
          %1755 = vmatpush1.msra.mxu0 0.0
          %1756 = vmatprep.subr.mxu0 0.0
          %1757 = vmatpush1.msra.mxu0 0.0
          %1758 = vmatprep.subr.mxu0 0.0
          %1759 = vmatpush1.msra.mxu0 0.0
          %1760 = vmatprep.subr.mxu0 0.0
          %1761 = vmatpush1.msra.mxu0 0.0
          %1762 = vmatprep.subr.mxu0 0.0
          %1763 = vmatpush1.msra.mxu0 0.0
          %1764 = vmatprep.subr.mxu0 0.0
          %1765 = vmatpush1.msra.mxu0 0.0
          %1766 = vmatprep.subr.mxu0 0.0
          %1767 = vmatpush1.msra.mxu0 0.0
          %1768 = vmatprep.subr.mxu0 0.0
          %1769 = vmatpush1.msra.mxu0 0.0
          %1770 = vmatprep.subr.mxu0 0.0
          %1771 = vmatpush1.msra.mxu0 0.0
          %1772 = vmatprep.subr.mxu0 0.0
          %1773 = vmatpush1.msra.mxu0 0.0
          %1774 = vmatprep.subr.mxu0 0.0
          %1775 = vmatpush1.msra.mxu0 0.0
          %1776 = vmatprep.subr.mxu0 0.0
          %1777 = vmatpush1.msra.mxu0 0.0
          %1778 = vmatprep.subr.mxu0 0.0
          %1779 = vmatpush1.msra.mxu0 0.0
          %1780 = vmatprep.subr.mxu0 0.0
          %1781 = vmatpush1.msra.mxu0 0.0
          %1782 = vmatprep.subr.mxu0 0.0
          %1783 = vmatpush1.msra.mxu0 0.0
          %1784 = vmatprep.subr.mxu0 0.0
          %1785 = vmatpush1.msra.mxu0 0.0
          %1786 = vmatprep.subr.mxu0 0.0
          %1787 = vmatpush1.msra.mxu0 0.0
          %1788 = vmatprep.subr.mxu0 0.0
          %1789 = vmatpush1.msra.mxu0 0.0
          %1790 = vmatprep.subr.mxu0 0.0
          %1791 = vmatpush1.msra.mxu0 0.0
          %1792 = vmatprep.subr.mxu0 0.0
          %1793 = vmatpush1.msra.mxu0 0.0
          %1794 = vmatprep.subr.mxu0 0.0
          %1795 = vmatpush1.msra.mxu0 0.0
          %1796 = vmatprep.subr.mxu0 0.0
          %1797 = vmatpush1.msra.mxu0 0.0
          %1798 = vmatprep.subr.mxu0 0.0
          %1799 = vmatpush1.msra.mxu0 0.0
          %1800 = vmatprep.mubr.f32.mxu0 0.0
          %1801 = vmatmul.mubr.f32.gmra.mrb[0].mxu0 %v1734
          %v1802 = vpop.f32.mrb[0].mxu0
          %v1803 = vadd.f32 0.0, %v1802
          %v1804 = vpop.f32.mrb[0].mxu0
          %1805 = vdwg.mxu0
          %v1806 = vadd.f32 %v1722, %v1803
          %1807 = vst [vmem:[%s440] sm:$0xff] %v1806
        $region84: #{tpu_custom_call.1} parent=47 // pred_fallthru
          _
        %s1808 = sand.u32 %s215, 1
        %s1809 = scalar_lea.sflag [#allocation8], %s1808
        %s1810 = sand.u32 %s215, 1
        %s1811 = smul.addr %s1810, 8
        %s1812 = scalar_lea.vmem [#allocation18], %s1811
        // Predicated region
        $region85: #{tpu_custom_call.1} parent=47 // pred_check
          %p1813 = pneg %p225
        $region86: #{tpu_custom_call.1} parent=47 // pred_check_branch
          %1815 = sbr.rel (%p1813) target = $region88
        $region87: #{tpu_custom_call.1} parent=47 // pred_region
          %s1817 = ssub.s32 128, 128
          %1818 = vsyncadd %s1809, %s1817
          %s1819 = smul.addr %s33, 128
          %s1820 = scalar_lea.hbm %s7, %s1819
          %s1822 = sshll.u32 %s1812, 4
          %s1823 = int_to_ptr.vmem [resolvable:$true] %s1822
          %1825 = dma.vmem_to_hbm [thread:$0]  %s1823, 128, %s1820, %s1809
        $region88: #{tpu_custom_call.1} parent=47 // pred_fallthru
          _
      $region48: #{tpu_custom_call.1} parent=5 // pred_fallthru
        _
      %p1826 = scmp.le.s32.totalorder 2, %s24
      // Predicated region
      $region89: #{tpu_custom_call.1} parent=5 // pred_check
        %p1827 = pneg %p1826
      $region90: #{tpu_custom_call.1} parent=5 // pred_check_branch
        %1829 = sbr.rel (%p1827) target = $region92
      $region91: #{tpu_custom_call.1} parent=5 // pred_region
        %s1830 = ssub.s32 %s24, 2
        // Predicated region
        $region93: #{tpu_custom_call.1} parent=91 // pred_check
          %p1831 = pneg %p231
        $region94: #{tpu_custom_call.1} parent=91 // pred_check_branch
          %1833 = sbr.rel (%p1831) target = $region96
        $region95: #{tpu_custom_call.1} parent=91 // pred_region
          %s1834 = sand.u32 %s216, 1
          %s1835 = scalar_lea.sflag [#allocation8], %s1834
          %s1836 = sand.u32 %s216, 1
          %s1837 = smul.addr %s1836, 8
          %s1838 = scalar_lea.vmem [#allocation18], %s1837
          %1839 = dma.done %s1835, 128
        $region96: #{tpu_custom_call.1} parent=91 // pred_fallthru
          _
      $region92: #{tpu_custom_call.1} parent=5 // pred_fallthru
        _
    $region6: #{tpu_custom_call.1} parent=1 // loop_footer
      %s28 = sadd.s32 1, %s24
    $region7: #{tpu_custom_call.1} parent=1 // loop_footer_branch
      %23 = sbr.rel target = $region3
    $region8: #{tpu_custom_call.1} parent=1 // loop_exit
      _
    %1840 = vsyncpa [#allocation7], 1
    %s1841 = scalar_lea.sflag [#allocation7], 1
    %1842 = vsyncpa %s1841, 1
    %1843 = vsyncpa [#allocation10], 1
    %s1844 = scalar_lea.sflag [#allocation10], 1
    %1845 = vsyncpa %s1844, 1
    %1846 = vsyncpa [#allocation13], 1
    %1847 = vsyncpa [#allocation16], 1
    %1848 = vsyncpa [#allocation8], 1
    %s1849 = scalar_lea.sflag [#allocation8], 1
    %1850 = vsyncpa %s1849, 1

</llo_original>
